<compile_context>
chip_gen: v7x
topology: tpu7x:2x2x1
jax: 0.10.0
libtpu: 0.0.40
codegen_flags: <defaults>
</compile_context>

<pallas_src>
import jax
import jax.numpy as jnp
from jax import lax
from jax.experimental import pallas as pl
from jax.experimental.pallas import tpu as pltpu

EPS = 1e-5


def conv_down_forward(x, params, *, activation=jax.nn.relu):
    """x: (N, Cin, D, H, W) float32 -> (N, Cout, ceil(D/2), ceil(H/2), ceil(W/2))."""
    w3, b3, gamma, beta = (params[k] for k in ("w3", "b3", "gamma", "beta"))
    N, Cin, D, H, W = x.shape
    Cout = w3.shape[0]
    Do, Ho, Wo = (D + 1) // 2, (H + 1) // 2, (W + 1) // 2
    HW = Ho * Wo
    C8 = 8 * Cin                      # parity-split channels (pd, ph, pw, cin)
    K1 = 4 * C8                       # + baked in-plane taps (oh, ow): contiguous K block
    S = Do * HW                       # output spatial extent per (n, cout)
    M_out = N * Do * HW

    # ---------------- glue: bf16 first, pad, parity split, bake (oh, ow) taps -------
    xb = x.astype(jnp.bfloat16)                                   # cast before relayouts
    x_cl = jnp.transpose(xb, (0, 2, 3, 4, 1))                     # (N, D, H, W, Cin)
    Dp, Hp, Wp = 2 * (Do + 1), 2 * (Ho + 1), 2 * (Wo + 1)
    xp = jnp.pad(x_cl, ((0, 0), (1, Dp - D - 1), (1, Hp - H - 1),
                        (1, Wp - W - 1), (0, 0)))
    xs = xp.reshape(N, Do + 1, 2, Ho + 1, 2, Wo + 1, 2, Cin)
    xs = jnp.transpose(xs, (0, 1, 3, 5, 2, 4, 6, 7))              # (..., pd, ph, pw, cin)
    xs = xs.reshape(N, Do + 1, Ho + 1, Wo + 1, C8)
    # bake the in-plane (oh, ow) offsets -> each plane row holds one contiguous K block
    taps = [xs[:, :, oh:oh + Ho, ow:ow + Wo, :] for oh in (0, 1) for ow in (0, 1)]
    xs2 = jnp.stack(taps, axis=4).reshape(N, Do + 1, HW, K1)      # bf16

    # Effective weights: original tap k = 2*offset + parity; pad 3 -> 4 so the split is
    # a plain reshape (the (offset, parity) = (1,1) slots are zero).
    w3p = jnp.pad(w3, ((0, 0), (0, 0), (0, 1), (0, 1), (0, 1)))   # (Cout, Cin, 4,4,4)
    w3p = w3p.reshape(Cout, Cin, 2, 2, 2, 2, 2, 2)                # od,pd,oh,ph,ow,pw
    w_eff = jnp.transpose(w3p, (2, 4, 6, 3, 5, 7, 1, 0))          # (od,oh,ow,pd,ph,pw,cin,cout)
    w_eff = w_eff.reshape(2, K1, Cout).astype(jnp.bfloat16)

    # ---------------- depth tiling: TD output planes per step -----------------------
    plane_bytes = HW * K1 * 2
    td_target = max(1, (4 << 20) // plane_bytes)
    divs = [d for d in range(1, Do + 1) if Do % d == 0 and d <= min(Do, td_target)]
    lane_ok = [d for d in divs if (d * HW) % 128 == 0 or d == Do]  # lane-dense stores
    TD = max(lane_ok) if lane_ok else max(divs)
    nT = Do // TD
    MT = TD * HW

    # ---------------- Kernel A: conv (3 fused-K dots) + partial BN statistics -------
    def conv_stats_kernel(main_ref, halo_ref, w_ref, conv_ref, sum_ref, ssq_ref):
        m2 = main_ref[...].reshape(MT, K1)        # planes [t*TD, t*TD+TD), bf16
        hal = halo_ref[...].reshape(HW, K1)       # plane  t*TD+TD (depth halo), bf16
        acc = jnp.dot(m2, w_ref[0], preferred_element_type=jnp.float32)   # od = 0
        top = jnp.dot(hal, w_ref[1], preferred_element_type=jnp.float32)  # od = 1, last plane
        if TD > 1:
            up = jnp.dot(m2[HW:], w_ref[1], preferred_element_type=jnp.float32)
            shift = jnp.concatenate([up, top], axis=0)
        else:
            shift = top
        acc = acc + shift                          # (MT, Cout) f32, conv (no bias)
        # partial BN statistics in f32 (per (n, depth-chunk) -> reduced in glue)
        sum_ref[...] = jnp.sum(acc, axis=0).reshape(1, 1, Cout, 1)
        ssq_ref[...] = jnp.sum(acc * acc, axis=0).reshape(1, 1, Cout, 1)
        # channel-major, lane-dense bf16 store of the intermediate
        conv_ref[...] = acc.T.reshape(1, Cout, MT).astype(jnp.bfloat16)

    conv_cm, psum, pssq = pl.pallas_call(
        conv_stats_kernel,
        out_shape=(jax.ShapeDtypeStruct((N, Cout, S), jnp.bfloat16),
                   jax.ShapeDtypeStruct((N, nT, Cout, 1), jnp.float32),
                   jax.ShapeDtypeStruct((N, nT, Cout, 1), jnp.float32)),
        grid=(N, nT),
        in_specs=[
            # TD planes of this chunk (fetched once)
            pl.BlockSpec((1, TD, HW, K1), lambda n, t: (n, t, 0, 0)),
            # single depth-halo plane (the only re-fetched plane -> (TD+1)/TD factor)
            pl.BlockSpec((1, 1, HW, K1), lambda n, t: (n, t * TD + TD, 0, 0)),
            pl.BlockSpec((2, K1, Cout), lambda n, t: (0, 0, 0)),
        ],
        out_specs=(
            pl.BlockSpec((1, Cout, MT), lambda n, t: (n, 0, t)),
            pl.BlockSpec((1, 1, Cout, 1), lambda n, t: (n, t, 0, 0)),
            pl.BlockSpec((1, 1, Cout, 1), lambda n, t: (n, t, 0, 0)),
        ),
        compiler_params=pltpu.CompilerParams(
            dimension_semantics=("parallel", "parallel")),
    )(xs2, xs2, w_eff)

    # ---------------- glue: BN finalize, folded per-channel affine ------------------
    # TODO(synk): E[x^2]-E[x]^2 in f32 can cancel for very large M; use a centered /
    # Welford finalize for production sizes.
    s_tot = jnp.sum(psum, axis=(0, 1)).reshape(Cout)
    ss_tot = jnp.sum(pssq, axis=(0, 1)).reshape(Cout)
    mean = s_tot / M_out
    var = ss_tot / M_out - mean * mean
    invstd = lax.rsqrt(var + EPS)
    a_vec = gamma.astype(jnp.float32) * invstd
    # Fold the conv bias exactly: kernel A stored conv WITHOUT bias; batch-norm of
    # (conv + b3) with batch statistics makes the constant per-channel bias cancel,
    # so b_eff = beta + a*b3 - a*(mean_conv + b3) == beta - a*mean_conv.
    b3f = b3.astype(jnp.float32)
    b_vec = beta.astype(jnp.float32) + a_vec * b3f - a_vec * (mean + b3f)
    a_cm = a_vec.reshape(1, Cout, 1)
    b_cm = b_vec.reshape(1, Cout, 1)

    # ---------------- Kernel B: fused BN affine + activation, NCDHW layout ----------
    def bn_act_kernel(conv_ref, a_ref, b_ref, out_ref):
        out_ref[...] = activation(a_ref[...] * conv_ref[...].astype(jnp.float32)
                                  + b_ref[...])

    # Lane-dense tiles; cap so double-buffered in+out stays a few MiB (v7x-safe);
    # cdiv grid + masked tail -> no divisor requirement on S.
    L = S if S <= 32768 else 32768
    nL = (S + L - 1) // L
    out_cm = pl.pallas_call(
        bn_act_kernel,
        out_shape=jax.ShapeDtypeStruct((N, Cout, S), jnp.float32),
        grid=(N, nL),
        in_specs=[pl.BlockSpec((1, Cout, L), lambda n, j: (n, 0, j)),
                  pl.BlockSpec((1, Cout, 1), lambda n, j: (0, 0, 0)),
                  pl.BlockSpec((1, Cout, 1), lambda n, j: (0, 0, 0))],
        out_specs=pl.BlockSpec((1, Cout, L), lambda n, j: (n, 0, j)),
        compiler_params=pltpu.CompilerParams(
            dimension_semantics=("parallel", "parallel")),
    )(conv_cm, a_cm, b_cm)

    # (N, Cout, Do*Ho*Wo) -> (N, Cout, Do, Ho, Wo): pure dim split, no data movement.
    return out_cm.reshape(N, Cout, Do, Ho, Wo)


# ----------------------------- pure-JAX reference ----------------------------------
def conv_down_reference(x, params, *, activation=jax.nn.relu):
    w3, b3, gamma, beta = (params[k] for k in ("w3", "b3", "gamma", "beta"))
    Cout = w3.shape[0]
    conv = lax.conv_general_dilated(
        x, w3, window_strides=(2, 2, 2), padding=((1, 1), (1, 1), (1, 1)),
        dimension_numbers=("NCDHW", "OIDHW", "NCDHW")) + b3.reshape(1, Cout, 1, 1, 1)
    mean = jnp.mean(conv, axis=(0, 2, 3, 4), keepdims=True)
    var = jnp.mean((conv - mean) ** 2, axis=(0, 2, 3, 4), keepdims=True)
    bn = (gamma.reshape(1, Cout, 1, 1, 1) * (conv - mean) * lax.rsqrt(var + EPS)
          + beta.reshape(1, Cout, 1, 1, 1))
    return activation(bn)


if __name__ == "__main__":
    # TODO(synk): SynchronizedBatchNorm3d's cross-replica statistic sync (and running
    # mean/var buffer updates) are not modeled; single-device training batch stats are
    # used, which matches the forward output on one device.
    in_dim, out_dim = 4, 8
    N, D, H, W = 2, 16, 16, 16

    key = jax.random.PRNGKey(0)
    k_x, k_w3, k_b3, k_g, k_bt = jax.random.split(key, 5)

    x = jax.random.normal(k_x, (N, in_dim, D, H, W), dtype=jnp.float32)
    params = {
        "w3": 0.1 * jax.random.normal(k_w3, (out_dim, in_dim, 3, 3, 3), jnp.float32),
        "b3": 0.05 * jax.random.normal(k_b3, (out_dim,), jnp.float32),
        "gamma": 1.0 + 0.1 * jax.random.normal(k_g, (out_dim,), jnp.float32),
        "beta": 0.1 * jax.random.normal(k_bt, (out_dim,), jnp.float32),
    }

    result = jax.jit(conv_down_forward)(x, params)
    result = jax.block_until_ready(result)

    expected = conv_down_reference(x, params)
    assert result.shape == (N, out_dim, D // 2, H // 2, W // 2)
    err = jnp.max(jnp.abs(result - expected))
    assert jnp.allclose(result, expected, rtol=3e-2, atol=3e-2), f"max abs err = {err}"

    print("KERNEL_OK")
</pallas_src>

<mosaic_0001>
module attributes {stable_mosaic.version = 11 : i64} {
  func.func @conv_stats_kernel(%arg0: i32, %arg1: i32, %arg2: memref<1x8x64x128xbf16, #tpu.memory_space<vmem>>, %arg3: memref<1x1x64x128xbf16, #tpu.memory_space<vmem>>, %arg4: memref<2x128x8xbf16, #tpu.memory_space<vmem>>, %arg5: memref<1x8x512xbf16, #tpu.memory_space<vmem>>, %arg6: memref<1x1x8x1xf32, #tpu.memory_space<vmem>>, %arg7: memref<1x1x8x1xf32, #tpu.memory_space<vmem>>) attributes {dimension_semantics = [#tpu.dimension_semantics<parallel>, #tpu.dimension_semantics<parallel>], iteration_bounds = array<i64: 2, 1>, scalar_prefetch = 0 : i64, scratch_operands = 0 : i64, tpu.core_type = #tpu.core_type<tc>, window_params = [{transform_indices = @transform_0, window_bounds = array<i64: 1, 8, 64, 128>}, {transform_indices = @transform_1, window_bounds = array<i64: 1, 1, 64, 128>}, {pipeline_mode = #tpu.pipeline_mode<synchronous>, transform_indices = @transform_2, window_bounds = array<i64: 2, 128, 8>}, {transform_indices = @transform_3, window_bounds = array<i64: 1, 8, 512>}, {transform_indices = @transform_4, window_bounds = array<i64: 1, 1, 8, 1>}, {transform_indices = @transform_5, window_bounds = array<i64: 1, 1, 8, 1>}]} {
    %c0 = arith.constant 0 : index
    %c0_0 = arith.constant 0 : index
    %c0_1 = arith.constant 0 : index
    %c0_2 = arith.constant 0 : index
    %0 = vector.load %arg2[%c0, %c0_0, %c0_1, %c0_2] : memref<1x8x64x128xbf16, #tpu.memory_space<vmem>>, vector<1x8x64x128xbf16>
    %1 = vector.shape_cast %0 : vector<1x8x64x128xbf16> to vector<512x128xbf16>
    %c0_3 = arith.constant 0 : index
    %c0_4 = arith.constant 0 : index
    %c0_5 = arith.constant 0 : index
    %c0_6 = arith.constant 0 : index
    %2 = vector.load %arg3[%c0_3, %c0_4, %c0_5, %c0_6] : memref<1x1x64x128xbf16, #tpu.memory_space<vmem>>, vector<1x1x64x128xbf16>
    %3 = vector.shape_cast %2 : vector<1x1x64x128xbf16> to vector<64x128xbf16>
    %c0_7 = arith.constant 0 : index
    %c0_8 = arith.constant 0 : index
    %c0_9 = arith.constant 0 : index
    %4 = vector.load %arg4[%c0_7, %c0_8, %c0_9] : memref<2x128x8xbf16, #tpu.memory_space<vmem>>, vector<1x128x8xbf16>
    %5 = vector.shape_cast %4 : vector<1x128x8xbf16> to vector<128x8xbf16>
    %cst = arith.constant dense<0.000000e+00> : vector<512x8xf32>
    %6 = tpu.matmul %1, %5, %cst {dimension_numbers = #tpu.dot_dimension_numbers<[1], [0], [0], [1], [0, 0, 1, 1], [], []>} : vector<512x128xbf16>, vector<128x8xbf16>, vector<512x8xf32> -> vector<512x8xf32>
    %c1 = arith.constant 1 : index
    %c0_10 = arith.constant 0 : index
    %c0_11 = arith.constant 0 : index
    %7 = vector.load %arg4[%c1, %c0_10, %c0_11] : memref<2x128x8xbf16, #tpu.memory_space<vmem>>, vector<1x128x8xbf16>
    %8 = vector.shape_cast %7 : vector<1x128x8xbf16> to vector<128x8xbf16>
    %cst_12 = arith.constant dense<0.000000e+00> : vector<64x8xf32>
    %9 = tpu.matmul %3, %8, %cst_12 {dimension_numbers = #tpu.dot_dimension_numbers<[1], [0], [0], [1], [0, 0, 1, 1], [], []>} : vector<64x128xbf16>, vector<128x8xbf16>, vector<64x8xf32> -> vector<64x8xf32>
    %10 = vector.extract_strided_slice %1 {offsets = [64, 0], sizes = [448, 128], strides = [1, 1]} : vector<512x128xbf16> to vector<448x128xbf16>
    %c1_13 = arith.constant 1 : index
    %c0_14 = arith.constant 0 : index
    %c0_15 = arith.constant 0 : index
    %11 = vector.load %arg4[%c1_13, %c0_14, %c0_15] : memref<2x128x8xbf16, #tpu.memory_space<vmem>>, vector<1x128x8xbf16>
    %12 = vector.shape_cast %11 : vector<1x128x8xbf16> to vector<128x8xbf16>
    %cst_16 = arith.constant dense<0.000000e+00> : vector<448x8xf32>
    %13 = tpu.matmul %10, %12, %cst_16 {dimension_numbers = #tpu.dot_dimension_numbers<[1], [0], [0], [1], [0, 0, 1, 1], [], []>} : vector<448x128xbf16>, vector<128x8xbf16>, vector<448x8xf32> -> vector<448x8xf32>
    %14 = tpu.concatenate %13, %9 in 0 : vector<448x8xf32>, vector<64x8xf32> -> vector<512x8xf32>
    %15 = arith.addf %6, %14 : vector<512x8xf32>
    %cst_17 = arith.constant dense<0.000000e+00> : vector<8xf32>
    %16 = vector.multi_reduction <add>, %15, %cst_17 [0] : vector<512x8xf32> to vector<8xf32>
    %17 = vector.shape_cast %16 : vector<8xf32> to vector<1x1x8x1xf32>
    %c0_18 = arith.constant 0 : index
    %c0_19 = arith.constant 0 : index
    %c0_20 = arith.constant 0 : index
    %c0_21 = arith.constant 0 : index
    %18 = vector.load %arg6[%c0_18, %c0_19, %c0_20, %c0_21] : memref<1x1x8x1xf32, #tpu.memory_space<vmem>>, vector<1x1x8x1xf32>
    tpu.vector_store %arg6[%c0_18, %c0_19, %c0_20, %c0_21], %17 {strides = array<i32>} : memref<1x1x8x1xf32, #tpu.memory_space<vmem>>, vector<1x1x8x1xf32>,
    %19 = arith.mulf %15, %15 : vector<512x8xf32>
    %cst_22 = arith.constant dense<0.000000e+00> : vector<8xf32>
    %20 = vector.multi_reduction <add>, %19, %cst_22 [0] : vector<512x8xf32> to vector<8xf32>
    %21 = vector.shape_cast %20 : vector<8xf32> to vector<1x1x8x1xf32>
    %c0_23 = arith.constant 0 : index
    %c0_24 = arith.constant 0 : index
    %c0_25 = arith.constant 0 : index
    %c0_26 = arith.constant 0 : index
    %22 = vector.load %arg7[%c0_23, %c0_24, %c0_25, %c0_26] : memref<1x1x8x1xf32, #tpu.memory_space<vmem>>, vector<1x1x8x1xf32>
    tpu.vector_store %arg7[%c0_23, %c0_24, %c0_25, %c0_26], %21 {strides = array<i32>} : memref<1x1x8x1xf32, #tpu.memory_space<vmem>>, vector<1x1x8x1xf32>,
    %23 = tpu.transpose %15, [1, 0] : vector<512x8xf32> -> vector<8x512xf32>
    %24 = vector.shape_cast %23 : vector<8x512xf32> to vector<1x8x512xf32>
    %25 = arith.truncf %24 : vector<1x8x512xf32> to vector<1x8x512xbf16>
    %c0_27 = arith.constant 0 : index
    %c0_28 = arith.constant 0 : index
    %c0_29 = arith.constant 0 : index
    %26 = vector.load %arg5[%c0_27, %c0_28, %c0_29] : memref<1x8x512xbf16, #tpu.memory_space<vmem>>, vector<1x8x512xbf16>
    tpu.vector_store %arg5[%c0_27, %c0_28, %c0_29], %25 {strides = array<i32>} : memref<1x8x512xbf16, #tpu.memory_space<vmem>>, vector<1x8x512xbf16>,
    return
  }
  func.func @transform_0(%arg0: i32, %arg1: i32) -> (i32, i32, i32, i32) {
    %c0_i32 = arith.constant 0 : i32
    %c0_i32_0 = arith.constant 0 : i32
    %c0_i32_1 = arith.constant 0 : i32
    return %arg0, %arg1, %c0_i32, %c0_i32_0 : i32, i32, i32, i32
  }
  func.func @transform_1(%arg0: i32, %arg1: i32) -> (i32, i32, i32, i32) {
    %c8_i32 = arith.constant 8 : i32
    %0 = arith.muli %arg1, %c8_i32 : i32
    %c8_i32_0 = arith.constant 8 : i32
    %1 = arith.addi %0, %c8_i32_0 : i32
    %c0_i32 = arith.constant 0 : i32
    %c0_i32_1 = arith.constant 0 : i32
    %c0_i32_2 = arith.constant 0 : i32
    return %arg0, %1, %c0_i32, %c0_i32_1 : i32, i32, i32, i32
  }
  func.func @transform_2(%arg0: i32, %arg1: i32) -> (i32, i32, i32) {
    %c0_i32 = arith.constant 0 : i32
    %c0_i32_0 = arith.constant 0 : i32
    %c0_i32_1 = arith.constant 0 : i32
    %c0_i32_2 = arith.constant 0 : i32
    return %c0_i32, %c0_i32_0, %c0_i32_1 : i32, i32, i32
  }
  func.func @transform_3(%arg0: i32, %arg1: i32) -> (i32, i32, i32) {
    %c0_i32 = arith.constant 0 : i32
    %c0_i32_0 = arith.constant 0 : i32
    return %arg0, %c0_i32, %arg1 : i32, i32, i32
  }
  func.func @transform_4(%arg0: i32, %arg1: i32) -> (i32, i32, i32, i32) {
    %c0_i32 = arith.constant 0 : i32
    %c0_i32_0 = arith.constant 0 : i32
    %c0_i32_1 = arith.constant 0 : i32
    return %arg0, %arg1, %c0_i32, %c0_i32_0 : i32, i32, i32, i32
  }
  func.func @transform_5(%arg0: i32, %arg1: i32) -> (i32, i32, i32, i32) {
    %c0_i32 = arith.constant 0 : i32
    %c0_i32_0 = arith.constant 0 : i32
    %c0_i32_1 = arith.constant 0 : i32
    return %arg0, %arg1, %c0_i32, %c0_i32_0 : i32, i32, i32, i32
  }
}

module attributes {stable_mosaic.version = 11 : i64} {
  func.func @bn_act_kernel(%arg0: i32, %arg1: i32, %arg2: memref<1x8x512xbf16, #tpu.memory_space<vmem>>, %arg3: memref<1x8x1xf32, #tpu.memory_space<vmem>>, %arg4: memref<1x8x1xf32, #tpu.memory_space<vmem>>, %arg5: memref<1x8x512xf32, #tpu.memory_space<vmem>>) attributes {dimension_semantics = [#tpu.dimension_semantics<parallel>, #tpu.dimension_semantics<parallel>], iteration_bounds = array<i64: 2, 1>, scalar_prefetch = 0 : i64, scratch_operands = 0 : i64, tpu.core_type = #tpu.core_type<tc>, window_params = [{transform_indices = @transform_0, window_bounds = array<i64: 1, 8, 512>}, {pipeline_mode = #tpu.pipeline_mode<synchronous>, transform_indices = @transform_1, window_bounds = array<i64: 1, 8, 1>}, {pipeline_mode = #tpu.pipeline_mode<synchronous>, transform_indices = @transform_2, window_bounds = array<i64: 1, 8, 1>}, {transform_indices = @transform_3, window_bounds = array<i64: 1, 8, 512>}]} {
    %c0 = arith.constant 0 : index
    %c0_0 = arith.constant 0 : index
    %c0_1 = arith.constant 0 : index
    %0 = vector.load %arg3[%c0, %c0_0, %c0_1] : memref<1x8x1xf32, #tpu.memory_space<vmem>>, vector<1x8x1xf32>
    %c0_2 = arith.constant 0 : index
    %c0_3 = arith.constant 0 : index
    %c0_4 = arith.constant 0 : index
    %1 = vector.load %arg2[%c0_2, %c0_3, %c0_4] : memref<1x8x512xbf16, #tpu.memory_space<vmem>>, vector<1x8x512xbf16>
    %2 = arith.extf %1 : vector<1x8x512xbf16> to vector<1x8x512xf32>
    %3 = vector.broadcast %0 : vector<1x8x1xf32> to vector<1x8x512xf32>
    %4 = arith.mulf %3, %2 : vector<1x8x512xf32>
    %c0_5 = arith.constant 0 : index
    %c0_6 = arith.constant 0 : index
    %c0_7 = arith.constant 0 : index
    %5 = vector.load %arg4[%c0_5, %c0_6, %c0_7] : memref<1x8x1xf32, #tpu.memory_space<vmem>>, vector<1x8x1xf32>
    %6 = vector.broadcast %5 : vector<1x8x1xf32> to vector<1x8x512xf32>
    %7 = arith.addf %4, %6 : vector<1x8x512xf32>
    %cst = arith.constant 0.000000e+00 : f32
    %8 = vector.broadcast %cst : f32 to vector<1x8x512xf32>
    %9 = arith.maximumf %7, %8 : vector<1x8x512xf32>
    %c0_8 = arith.constant 0 : index
    %c0_9 = arith.constant 0 : index
    %c0_10 = arith.constant 0 : index
    %10 = vector.load %arg5[%c0_8, %c0_9, %c0_10] : memref<1x8x512xf32, #tpu.memory_space<vmem>>, vector<1x8x512xf32>
    tpu.vector_store %arg5[%c0_8, %c0_9, %c0_10], %9 {strides = array<i32>} : memref<1x8x512xf32, #tpu.memory_space<vmem>>, vector<1x8x512xf32>,
    return
  }
  func.func @transform_0(%arg0: i32, %arg1: i32) -> (i32, i32, i32) {
    %c0_i32 = arith.constant 0 : i32
    %c0_i32_0 = arith.constant 0 : i32
    return %arg0, %c0_i32, %arg1 : i32, i32, i32
  }
  func.func @transform_1(%arg0: i32, %arg1: i32) -> (i32, i32, i32) {
    %c0_i32 = arith.constant 0 : i32
    %c0_i32_0 = arith.constant 0 : i32
    %c0_i32_1 = arith.constant 0 : i32
    %c0_i32_2 = arith.constant 0 : i32
    return %c0_i32, %c0_i32_0, %c0_i32_1 : i32, i32, i32
  }
  func.func @transform_2(%arg0: i32, %arg1: i32) -> (i32, i32, i32) {
    %c0_i32 = arith.constant 0 : i32
    %c0_i32_0 = arith.constant 0 : i32
    %c0_i32_1 = arith.constant 0 : i32
    %c0_i32_2 = arith.constant 0 : i32
    return %c0_i32, %c0_i32_0, %c0_i32_1 : i32, i32, i32
  }
  func.func @transform_3(%arg0: i32, %arg1: i32) -> (i32, i32, i32) {
    %c0_i32 = arith.constant 0 : i32
    %c0_i32_0 = arith.constant 0 : i32
    return %arg0, %c0_i32, %arg1 : i32, i32, i32
  }
}

</mosaic_0001>

<llo_original>
// kernel: conv_down_forward.2
$region0: #{conv_down_forward.2}
  #allocation0 [shape = 'u32[]', space=smem, size = 0x4, offset = 0x4, fixed_abs, tag = 'smem constant byte address 0x4 - core index']
  #allocation1 [shape = 'u32[144,128]{1,0:T(1,128)}', space=vmem, size = 0x12000, scoped, tag = 'internal scratch']
  %s0 = inlined_call_operand.vmem [shape: bf16[2,9,64,128], index: 0, kind: input, shape index: {}, may-alias: {0,1}]
  %s1 = inlined_call_operand.vmem [shape: bf16[2,9,64,128], index: 1, kind: input, shape index: {}, may-alias: {0,1}]
  %s2 = inlined_call_operand.vmem [shape: bf16[2,128,8], index: 2, kind: input, shape index: {}]
  %s3 = inlined_call_operand.vmem [shape: bf16[2,8,512], index: 3, kind: output, shape index: {0}]
  %s4 = inlined_call_operand.vmem [shape: f32[2,1,8,1], index: 4, kind: output, shape index: {1}]
  %s5 = inlined_call_operand.vmem [shape: f32[2,1,8,1], index: 5, kind: output, shape index: {2}]
  %6 = xla_tuple %s3, %s4, %s5
  %s7 = sld [smem:[#allocation0]]
  $region61: #{conv_down_forward.2} parent=0
    _
  %s9 = ssub.s32 1, %s7
  %s10 = scalar_select 0, %s9, %s7
  loop: start=0, step=1, limit=4
  $region2: #{conv_down_forward.2} parent=0 // loop_pre_header
    _
  $region3: #{conv_down_forward.2} parent=0 // loop_header
    %s12 = sphi 0, %s16
    %p13 = scmp.ge.s32.totalorder %s12, 4
    %s19 = sphi 0, %s31
    %s20 = sphi 0, %s27
    %s21 = sphi 0, %s19
    %s22 = sphi 0, %s20
    %s23 = sphi 0, %s21
    %s24 = sphi 0, %s22
    %s36 = sphi 0, %s38
    %s39 = sphi 0, %s36
    %s40 = sphi 0, %s39
    %s56 = sphi 0, %s40
    %s68 = sphi 0, %s70
    %s71 = sphi 0, %s68
    %s72 = sphi 0, %s71
    %s88 = sphi 0, %s72
    %s92 = sphi 0, %s92
    %s94 = sphi 0, %s92
    %s95 = sphi 0, %s94
    %s109 = sphi 0, %s95
    %s117 = sphi 0, %s119
    %s120 = sphi 0, %s117
    %s121 = sphi 0, %s120
    %s137 = sphi 0, %s121
    %s145 = sphi 0, %s147
    %s148 = sphi 0, %s145
    %s149 = sphi 0, %s148
    %s165 = sphi 0, %s149
    %s173 = sphi 0, %s175
    %s176 = sphi 0, %s173
    %s177 = sphi 0, %s176
    %s193 = sphi 0, %s177
  $region4: #{conv_down_forward.2} parent=0 // loop_header_branch
    %15 = sbr.rel (%p13) target = $region8
  $region5: #{conv_down_forward.2} parent=0 // loop_body
    %s17 = ssub.s32 %s12, 1
    %s18 = ssub.s32 %s12, 2
    %s25 = sadd.s32 1, %s20
    %p26 = scmp.ge.s32.totalorder %s25, 1
    %s27 = scalar_select %p26, 0, %s25
    %s28 = sadd.s32 1, %s19
    %s29 = scalar_select %p26, %s28, %s19
    %p30 = scmp.ge.s32.totalorder %s29, 2
    %s31 = scalar_select %p30, 0, %s29
    %s32 = ssub.s32 %s19, %s31
    %s33 = ssub.s32 %s20, %s27
    %s34 = sor.u32 %s32, %s33
    %p35 = scmp.eq.s32.totalorder %s34, 0
    %s37 = sadd.s32 %s36, 1
    %s38 = scalar_select %p35, %s36, %s37
    %p41 = pneg %p35
    %p42 = scmp.eq.s32.totalorder %s12, 1
    %p43 = por %p41, %p42
    %p44 = scmp.ne.s32.totalorder %s36, %s39
    %p45 = scmp.eq.s32.totalorder %s12, 0
    %p46 = por %p44, %p45
    %p47 = scmp.ne.s32.totalorder %s36, %s39
    %p48 = scmp.eq.s32.totalorder %s17, 1
    %p49 = por %p47, %p48
    %p50 = scmp.ne.s32.totalorder %s39, %s40
    %p51 = scmp.eq.s32.totalorder %s17, 0
    %p52 = por %p50, %p51
    %p53 = scmp.ne.s32.totalorder %s39, %s40
    %p54 = scmp.eq.s32.totalorder %s18, 1
    %p55 = por %p53, %p54
    %p57 = scmp.ne.s32.totalorder %s40, %s56
    %p58 = scmp.eq.s32.totalorder %s18, 0
    %p59 = por %p57, %p58
    %s60 = smul.u32 %s20, 8
    %s61 = sadd.s32 %s60, 8
    %s62 = smul.u32 %s27, 8
    %s63 = sadd.s32 %s62, 8
    %s64 = ssub.s32 %s19, %s31
    %s65 = ssub.s32 %s61, %s63
    %s66 = sor.u32 %s64, %s65
    %p67 = scmp.eq.s32.totalorder %s66, 0
    %s69 = sadd.s32 %s68, 1
    %s70 = scalar_select %p67, %s68, %s69
    %p73 = pneg %p67
    %p74 = scmp.eq.s32.totalorder %s12, 1
    %p75 = por %p73, %p74
    %p76 = scmp.ne.s32.totalorder %s68, %s71
    %p77 = scmp.eq.s32.totalorder %s12, 0
    %p78 = por %p76, %p77
    %p79 = scmp.ne.s32.totalorder %s68, %s71
    %p80 = scmp.eq.s32.totalorder %s17, 1
    %p81 = por %p79, %p80
    %p82 = scmp.ne.s32.totalorder %s71, %s72
    %p83 = scmp.eq.s32.totalorder %s17, 0
    %p84 = por %p82, %p83
    %p85 = scmp.ne.s32.totalorder %s71, %s72
    %p86 = scmp.eq.s32.totalorder %s18, 1
    %p87 = por %p85, %p86
    %p89 = scmp.ne.s32.totalorder %s72, %s88
    %p90 = scmp.eq.s32.totalorder %s18, 0
    %p91 = por %p89, %p90
    %s93 = sadd.s32 %s92, 1
    %p96 = scmp.eq.s32.totalorder %s12, 1
    %p97 = scmp.ne.s32.totalorder %s92, %s94
    %p98 = scmp.eq.s32.totalorder %s12, 0
    %p99 = por %p97, %p98
    %p100 = scmp.ne.s32.totalorder %s92, %s94
    %p101 = scmp.eq.s32.totalorder %s17, 1
    %p102 = por %p100, %p101
    %p103 = scmp.ne.s32.totalorder %s94, %s95
    %p104 = scmp.eq.s32.totalorder %s17, 0
    %p105 = por %p103, %p104
    %p106 = scmp.ne.s32.totalorder %s94, %s95
    %p107 = scmp.eq.s32.totalorder %s18, 1
    %p108 = por %p106, %p107
    %p110 = scmp.ne.s32.totalorder %s95, %s109
    %p111 = scmp.eq.s32.totalorder %s18, 0
    %p112 = por %p110, %p111
    %s113 = ssub.s32 %s19, %s31
    %s114 = ssub.s32 %s20, %s27
    %s115 = sor.u32 %s113, %s114
    %p116 = scmp.eq.s32.totalorder %s115, 0
    %s118 = sadd.s32 %s117, 1
    %s119 = scalar_select %p116, %s117, %s118
    %p122 = pneg %p116
    %p123 = scmp.eq.s32.totalorder %s12, 1
    %p124 = por %p122, %p123
    %p125 = scmp.ne.s32.totalorder %s117, %s120
    %p126 = scmp.eq.s32.totalorder %s12, 0
    %p127 = por %p125, %p126
    %p128 = scmp.ne.s32.totalorder %s117, %s120
    %p129 = scmp.eq.s32.totalorder %s17, 1
    %p130 = por %p128, %p129
    %p131 = scmp.ne.s32.totalorder %s120, %s121
    %p132 = scmp.eq.s32.totalorder %s17, 0
    %p133 = por %p131, %p132
    %p134 = scmp.ne.s32.totalorder %s120, %s121
    %p135 = scmp.eq.s32.totalorder %s18, 1
    %p136 = por %p134, %p135
    %p138 = scmp.ne.s32.totalorder %s121, %s137
    %p139 = scmp.eq.s32.totalorder %s18, 0
    %p140 = por %p138, %p139
    %s141 = ssub.s32 %s19, %s31
    %s142 = ssub.s32 %s20, %s27
    %s143 = sor.u32 %s141, %s142
    %p144 = scmp.eq.s32.totalorder %s143, 0
    %s146 = sadd.s32 %s145, 1
    %s147 = scalar_select %p144, %s145, %s146
    %p150 = pneg %p144
    %p151 = scmp.eq.s32.totalorder %s12, 1
    %p152 = por %p150, %p151
    %p153 = scmp.ne.s32.totalorder %s145, %s148
    %p154 = scmp.eq.s32.totalorder %s12, 0
    %p155 = por %p153, %p154
    %p156 = scmp.ne.s32.totalorder %s145, %s148
    %p157 = scmp.eq.s32.totalorder %s17, 1
    %p158 = por %p156, %p157
    %p159 = scmp.ne.s32.totalorder %s148, %s149
    %p160 = scmp.eq.s32.totalorder %s17, 0
    %p161 = por %p159, %p160
    %p162 = scmp.ne.s32.totalorder %s148, %s149
    %p163 = scmp.eq.s32.totalorder %s18, 1
    %p164 = por %p162, %p163
    %p166 = scmp.ne.s32.totalorder %s149, %s165
    %p167 = scmp.eq.s32.totalorder %s18, 0
    %p168 = por %p166, %p167
    %s169 = ssub.s32 %s19, %s31
    %s170 = ssub.s32 %s20, %s27
    %s171 = sor.u32 %s169, %s170
    %p172 = scmp.eq.s32.totalorder %s171, 0
    %s174 = sadd.s32 %s173, 1
    %s175 = scalar_select %p172, %s173, %s174
    %p178 = pneg %p172
    %p179 = scmp.eq.s32.totalorder %s12, 1
    %p180 = por %p178, %p179
    %p181 = scmp.ne.s32.totalorder %s173, %s176
    %p182 = scmp.eq.s32.totalorder %s12, 0
    %p183 = por %p181, %p182
    %p184 = scmp.ne.s32.totalorder %s173, %s176
    %p185 = scmp.eq.s32.totalorder %s17, 1
    %p186 = por %p184, %p185
    %p187 = scmp.ne.s32.totalorder %s176, %s177
    %p188 = scmp.eq.s32.totalorder %s17, 0
    %p189 = por %p187, %p188
    %p190 = scmp.ne.s32.totalorder %s176, %s177
    %p191 = scmp.eq.s32.totalorder %s18, 1
    %p192 = por %p190, %p191
    %p194 = scmp.ne.s32.totalorder %s177, %s193
    %p195 = scmp.eq.s32.totalorder %s18, 0
    %p196 = por %p194, %p195
    %p197 = scmp.le.s32.totalorder 1, %s12
    %p198 = scmp.lt.s32.totalorder %s12, 3
    %p199 = pnand %p197, %p198
    %p200 = pneg %p199
    // Predicated region
    $region9: #{conv_down_forward.2} parent=5 // pred_check
      _
    $region10: #{conv_down_forward.2} parent=5 // pred_check_branch
      %202 = sbr.rel (%p199) target = $region12
    $region11: #{conv_down_forward.2} parent=5 // pred_region
      %s203 = ssub.s32 %s12, 1
      // Predicated region
      $region13: #{conv_down_forward.2} parent=11 // pred_check
        %p204 = pneg %p105
      $region14: #{conv_down_forward.2} parent=11 // pred_check_branch
        %206 = sbr.rel (%p204) target = $region16
      $region15: #{conv_down_forward.2} parent=11 // pred_region
        _
      $region16: #{conv_down_forward.2} parent=11 // pred_fallthru
        _
    $region12: #{conv_down_forward.2} parent=5 // pred_fallthru
      _
    %p207 = scmp.lt.s32.totalorder %s12, 2
    // Predicated region
    $region17: #{conv_down_forward.2} parent=5 // pred_check
      %p208 = pneg %p207
    $region18: #{conv_down_forward.2} parent=5 // pred_check_branch
      %210 = sbr.rel (%p208) target = $region20
    $region19: #{conv_down_forward.2} parent=5 // pred_region
      // Predicated region
      $region21: #{conv_down_forward.2} parent=19 // pred_check
        %p211 = pneg %p46
      $region22: #{conv_down_forward.2} parent=19 // pred_check_branch
        %213 = sbr.rel (%p211) target = $region24
      $region23: #{conv_down_forward.2} parent=19 // pred_region
        %s214 = smul.u32 8, %s20
        %s215 = ssub.s32 9, %s214
        %p216 = scmp.lt.s32.totalorder %s215, 8
        %s217 = scalar_select %p216, %s215, 8
        %s218 = smul.u32 64, %s217
        %s219 = smul.u32 %s218, 8
        %p220 = scmp.lt.s32.totalorder %s19, 1
        %s221 = scalar_select %p220, %s19, 1
        %p222 = scmp.lt.s32.totalorder %s214, 8
        %s223 = scalar_select %p222, %s214, 8
        %s224 = smul.addr %s223, 8
        %s225 = smul.addr %s221, 72
        %s226 = sadd.s32 %s224, %s225
        %s227 = smul.addr %s226, 4
        %s228 = scalar_lea.vmem %s0, %s227
        %s229 = smul.u32 8, %s20
        %s230 = ssub.s32 9, %s229
        %p231 = scmp.lt.s32.totalorder %s230, 8
        %s232 = scalar_select %p231, %s230, 8
        %s233 = smul.u32 64, %s232
        %s234 = smul.u32 %s233, 8
      $region24: #{conv_down_forward.2} parent=19 // pred_fallthru
        _
      // Predicated region
      $region25: #{conv_down_forward.2} parent=19 // pred_check
        %p235 = pneg %p78
      $region26: #{conv_down_forward.2} parent=19 // pred_check_branch
        %237 = sbr.rel (%p235) target = $region28
      $region27: #{conv_down_forward.2} parent=19 // pred_region
        %s238 = smul.u32 %s20, 8
        %s239 = sadd.s32 %s238, 8
        %p240 = scmp.lt.s32.totalorder %s19, 1
        %s241 = scalar_select %p240, %s19, 1
        %p242 = scmp.lt.s32.totalorder %s239, 8
        %s243 = scalar_select %p242, %s239, 8
        %s244 = smul.addr %s243, 8
        %s245 = smul.addr %s241, 72
        %s246 = sadd.s32 %s244, %s245
        %s247 = smul.addr %s246, 4
        %s248 = scalar_lea.vmem %s1, %s247
        %s249 = smul.u32 %s20, 8
        %s250 = sadd.s32 %s249, 8
      $region28: #{conv_down_forward.2} parent=19 // pred_fallthru
        _
    $region20: #{conv_down_forward.2} parent=5 // pred_fallthru
      _
    %p251 = scmp.le.s32.totalorder 1, %s12
    %p252 = scmp.lt.s32.totalorder %s12, 3
    %p253 = pnand %p251, %p252
    %p254 = pneg %p253
    // Predicated region
    $region29: #{conv_down_forward.2} parent=5 // pred_check
      _
    $region30: #{conv_down_forward.2} parent=5 // pred_check_branch
      %256 = sbr.rel (%p253) target = $region32
    $region31: #{conv_down_forward.2} parent=5 // pred_region
      %s257 = ssub.s32 %s12, 1
      %s258 = smul.u32 8, %s22
      %s259 = ssub.s32 9, %s258
      %p260 = scmp.lt.s32.totalorder %s259, 8
      %s261 = scalar_select %p260, %s259, 8
      %s262 = smul.u32 64, %s261
      %s263 = smul.u32 %s262, 8
      %p264 = scmp.lt.s32.totalorder %s21, 1
      %s265 = scalar_select %p264, %s21, 1
      %p266 = scmp.lt.s32.totalorder %s258, 8
      %s267 = scalar_select %p266, %s258, 8
      %s268 = smul.addr %s267, 8
      %s269 = smul.addr %s265, 72
      %s270 = sadd.s32 %s268, %s269
      %s271 = smul.addr %s270, 4
      %s272 = scalar_lea.vmem %s0, %s271
      %p273 = pneg %p52
      %p274 = pneg %p49
      %s275 = smul.u32 %s22, 8
      %s276 = sadd.s32 %s275, 8
      %p277 = scmp.lt.s32.totalorder %s21, 1
      %s278 = scalar_select %p277, %s21, 1
      %p279 = scmp.lt.s32.totalorder %s276, 8
      %s280 = scalar_select %p279, %s276, 8
      %s281 = smul.addr %s280, 8
      %s282 = smul.addr %s278, 72
      %s283 = sadd.s32 %s281, %s282
      %s284 = smul.addr %s283, 4
      %s285 = scalar_lea.vmem %s1, %s284
      %p286 = pneg %p84
      %p287 = pneg %p81
      %p288 = pneg %p105
      %p289 = pneg %p102
      %p290 = pneg %p133
      %p291 = pneg %p130
      %s292 = smul.u32 4, %s22
      %p293 = scmp.lt.s32.totalorder %s21, 1
      %s294 = scalar_select %p293, %s21, 1
      %p295 = scmp.lt.s32.totalorder %s292, 3
      %s296 = scalar_select %p295, %s292, 3
      %s297 = smul.addr %s294, 4
      %s298 = sadd.s32 %s296, %s297
      %s299 = smul.addr %s298, 4
      %s300 = scalar_lea.vmem %s3, %s299
      %p301 = pneg %p161
      %p302 = pneg %p158
      %p303 = scmp.lt.s32.totalorder %s21, 1
      %s304 = scalar_select %p303, %s21, 1
      %p305 = scmp.lt.s32.totalorder %s22, 0
      %s306 = scalar_select %p305, %s22, 0
      %s307 = sadd.s32 %s306, %s304
      %s308 = smul.addr %s307, 8
      %s309 = scalar_lea.vmem %s4, %s308
      %p310 = pneg %p189
      %p311 = pneg %p186
      %p312 = scmp.lt.s32.totalorder %s21, 1
      %s313 = scalar_select %p312, %s21, 1
      %p314 = scmp.lt.s32.totalorder %s22, 0
      %s315 = scalar_select %p314, %s22, 0
      %s316 = sadd.s32 %s315, %s313
      %s317 = smul.addr %s316, 8
      %s318 = scalar_lea.vmem %s5, %s317
      %s319 = smul.u32 8, %s22
      %s320 = ssub.s32 9, %s319
      %p321 = scmp.lt.s32.totalorder %s320, 8
      %s322 = scalar_select %p321, %s320, 8
      %s323 = smul.u32 64, %s322
      %s324 = smul.u32 %s323, 8
      %p325 = scmp.lt.s32.totalorder %s21, 1
      %s326 = scalar_select %p325, %s21, 1
      %p327 = scmp.lt.s32.totalorder %s319, 8
      %s328 = scalar_select %p327, %s319, 8
      %s329 = smul.addr %s328, 8
      %s330 = smul.addr %s326, 72
      %s331 = sadd.s32 %s329, %s330
      %s332 = smul.addr %s331, 4
      %s333 = scalar_lea.vmem %s0, %s332
      %s334 = smul.u32 8, %s22
      %s335 = ssub.s32 9, %s334
      %p336 = scmp.lt.s32.totalorder %s335, 8
      %s337 = scalar_select %p336, %s335, 8
      %s338 = smul.u32 64, %s337
      %s339 = smul.u32 %s338, 8
      %s340 = smul.u32 %s22, 8
      %s341 = sadd.s32 %s340, 8
      %p342 = scmp.lt.s32.totalorder %s21, 1
      %s343 = scalar_select %p342, %s21, 1
      %p344 = scmp.lt.s32.totalorder %s341, 8
      %s345 = scalar_select %p344, %s341, 8
      %s346 = smul.addr %s345, 8
      %s347 = smul.addr %s343, 72
      %s348 = sadd.s32 %s346, %s347
      %s349 = smul.addr %s348, 4
      %s350 = scalar_lea.vmem %s1, %s349
      %s351 = smul.u32 %s22, 8
      %s352 = sadd.s32 %s351, 8
      %s353 = smul.u32 4, %s22
      %p354 = scmp.lt.s32.totalorder %s21, 1
      %s355 = scalar_select %p354, %s21, 1
      %p356 = scmp.lt.s32.totalorder %s353, 3
      %s357 = scalar_select %p356, %s353, 3
      %s358 = smul.addr %s355, 4
      %s359 = sadd.s32 %s357, %s358
      %s360 = smul.addr %s359, 4
      %s361 = scalar_lea.vmem %s3, %s360
      %s362 = smul.u32 4, %s22
      %p363 = scmp.lt.s32.totalorder %s21, 1
      %s364 = scalar_select %p363, %s21, 1
      %p365 = scmp.lt.s32.totalorder %s22, 0
      %s366 = scalar_select %p365, %s22, 0
      %s367 = sadd.s32 %s366, %s364
      %s368 = smul.addr %s367, 8
      %s369 = scalar_lea.vmem %s4, %s368
      %p370 = scmp.lt.s32.totalorder %s21, 1
      %s371 = scalar_select %p370, %s21, 1
      %p372 = scmp.lt.s32.totalorder %s22, 0
      %s373 = scalar_select %p372, %s22, 0
      %s374 = sadd.s32 %s373, %s371
      %s375 = smul.addr %s374, 8
      %s376 = scalar_lea.vmem %s5, %s375
      %v378 = vld [vmem:[%s333] sm:$0xf]
      %v379 = vld [vmem:[%s333 + $0x4] sm:$0xf]
      %v380 = vld [vmem:[%s333 + $0x8] sm:$0xf]
      %v381 = vld [vmem:[%s333 + $0xc] sm:$0xf]
      %v382 = vld [vmem:[%s333 + $0x10] sm:$0xf]
      %v383 = vld [vmem:[%s333 + $0x14] sm:$0xf]
      %v384 = vld [vmem:[%s333 + $0x18] sm:$0xf]
      %v385 = vld [vmem:[%s333 + $0x1c] sm:$0xf]
      %v386 = vld [vmem:[%s333 + $0x20] sm:$0xf]
      %v387 = vld [vmem:[%s333 + $0x24] sm:$0xf]
      %v388 = vld [vmem:[%s333 + $0x28] sm:$0xf]
      %v389 = vld [vmem:[%s333 + $0x2c] sm:$0xf]
      %v390 = vld [vmem:[%s333 + $0x30] sm:$0xf]
      %v391 = vld [vmem:[%s333 + $0x34] sm:$0xf]
      %v392 = vld [vmem:[%s333 + $0x38] sm:$0xf]
      %v393 = vld [vmem:[%s333 + $0x3c] sm:$0xf]
      %v394 = vld [vmem:[%s333 + $0x40] sm:$0xf]
      %v395 = vld [vmem:[%s333 + $0x44] sm:$0xf]
      %v396 = vld [vmem:[%s333 + $0x48] sm:$0xf]
      %v397 = vld [vmem:[%s333 + $0x4c] sm:$0xf]
      %v398 = vld [vmem:[%s333 + $0x50] sm:$0xf]
      %v399 = vld [vmem:[%s333 + $0x54] sm:$0xf]
      %v400 = vld [vmem:[%s333 + $0x58] sm:$0xf]
      %v401 = vld [vmem:[%s333 + $0x5c] sm:$0xf]
      %v402 = vld [vmem:[%s333 + $0x60] sm:$0xf]
      %v403 = vld [vmem:[%s333 + $0x64] sm:$0xf]
      %v404 = vld [vmem:[%s333 + $0x68] sm:$0xf]
      %v405 = vld [vmem:[%s333 + $0x6c] sm:$0xf]
      %v406 = vld [vmem:[%s333 + $0x70] sm:$0xf]
      %v407 = vld [vmem:[%s333 + $0x74] sm:$0xf]
      %v408 = vld [vmem:[%s333 + $0x78] sm:$0xf]
      %v409 = vld [vmem:[%s333 + $0x7c] sm:$0xf]
      %v410 = vld [vmem:[%s333 + $0x80] sm:$0xf]
      %v411 = vld [vmem:[%s333 + $0x84] sm:$0xf]
      %v412 = vld [vmem:[%s333 + $0x88] sm:$0xf]
      %v413 = vld [vmem:[%s333 + $0x8c] sm:$0xf]
      %v414 = vld [vmem:[%s333 + $0x90] sm:$0xf]
      %v415 = vld [vmem:[%s333 + $0x94] sm:$0xf]
      %v416 = vld [vmem:[%s333 + $0x98] sm:$0xf]
      %v417 = vld [vmem:[%s333 + $0x9c] sm:$0xf]
      %v418 = vld [vmem:[%s333 + $0xa0] sm:$0xf]
      %v419 = vld [vmem:[%s333 + $0xa4] sm:$0xf]
      %v420 = vld [vmem:[%s333 + $0xa8] sm:$0xf]
      %v421 = vld [vmem:[%s333 + $0xac] sm:$0xf]
      %v422 = vld [vmem:[%s333 + $0xb0] sm:$0xf]
      %v423 = vld [vmem:[%s333 + $0xb4] sm:$0xf]
      %v424 = vld [vmem:[%s333 + $0xb8] sm:$0xf]
      %v425 = vld [vmem:[%s333 + $0xbc] sm:$0xf]
      %v426 = vld [vmem:[%s333 + $0xc0] sm:$0xf]
      %v427 = vld [vmem:[%s333 + $0xc4] sm:$0xf]
      %v428 = vld [vmem:[%s333 + $0xc8] sm:$0xf]
      %v429 = vld [vmem:[%s333 + $0xcc] sm:$0xf]
      %v430 = vld [vmem:[%s333 + $0xd0] sm:$0xf]
      %v431 = vld [vmem:[%s333 + $0xd4] sm:$0xf]
      %v432 = vld [vmem:[%s333 + $0xd8] sm:$0xf]
      %v433 = vld [vmem:[%s333 + $0xdc] sm:$0xf]
      %v434 = vld [vmem:[%s333 + $0xe0] sm:$0xf]
      %v435 = vld [vmem:[%s333 + $0xe4] sm:$0xf]
      %v436 = vld [vmem:[%s333 + $0xe8] sm:$0xf]
      %v437 = vld [vmem:[%s333 + $0xec] sm:$0xf]
      %v438 = vld [vmem:[%s333 + $0xf0] sm:$0xf]
      %v439 = vld [vmem:[%s333 + $0xf4] sm:$0xf]
      %v440 = vld [vmem:[%s333 + $0xf8] sm:$0xf]
      %v441 = vld [vmem:[%s333 + $0xfc] sm:$0xf]
      %v442 = vld [vmem:[%s350] sm:$0xf]
      %v443 = vld [vmem:[%s350 + $0x4] sm:$0xf]
      %v444 = vld [vmem:[%s350 + $0x8] sm:$0xf]
      %v445 = vld [vmem:[%s350 + $0xc] sm:$0xf]
      %v446 = vld [vmem:[%s350 + $0x10] sm:$0xf]
      %v447 = vld [vmem:[%s350 + $0x14] sm:$0xf]
      %v448 = vld [vmem:[%s350 + $0x18] sm:$0xf]
      %v449 = vld [vmem:[%s350 + $0x1c] sm:$0xf]
      %v450 = vld [vmem:[%s2] sm:$0xf]
      %v451 = vld [vmem:[%s2 + $0x4] sm:$0xf]
      %v452 = vld [vmem:[%s2 + $0x8] sm:$0xf]
      %v453 = vld [vmem:[%s2 + $0xc] sm:$0xf]
      %v454 = vld [vmem:[%s2 + $0x10] sm:$0xf]
      %v455 = vld [vmem:[%s2 + $0x14] sm:$0xf]
      %v456 = vld [vmem:[%s2 + $0x18] sm:$0xf]
      %v457 = vld [vmem:[%s2 + $0x1c] sm:$0xf]
      %v458 = vld [vmem:[%s2 + $0x20] sm:$0xf]
      %v459 = vld [vmem:[%s2 + $0x24] sm:$0xf]
      %v460 = vld [vmem:[%s2 + $0x28] sm:$0xf]
      %v461 = vld [vmem:[%s2 + $0x2c] sm:$0xf]
      %v462 = vld [vmem:[%s2 + $0x30] sm:$0xf]
      %v463 = vld [vmem:[%s2 + $0x34] sm:$0xf]
      %v464 = vld [vmem:[%s2 + $0x38] sm:$0xf]
      %v465 = vld [vmem:[%s2 + $0x3c] sm:$0xf]
      %s466 = scalar_lea.vmem %s2, 64
      %v467 = vld [vmem:[%s466] sm:$0xf]
      %v468 = vld [vmem:[%s466 + $0x4] sm:$0xf]
      %v469 = vld [vmem:[%s466 + $0x8] sm:$0xf]
      %v470 = vld [vmem:[%s466 + $0xc] sm:$0xf]
      %v471 = vld [vmem:[%s466 + $0x10] sm:$0xf]
      %v472 = vld [vmem:[%s466 + $0x14] sm:$0xf]
      %v473 = vld [vmem:[%s466 + $0x18] sm:$0xf]
      %v474 = vld [vmem:[%s466 + $0x1c] sm:$0xf]
      %v475 = vld [vmem:[%s466 + $0x20] sm:$0xf]
      %v476 = vld [vmem:[%s466 + $0x24] sm:$0xf]
      %v477 = vld [vmem:[%s466 + $0x28] sm:$0xf]
      %v478 = vld [vmem:[%s466 + $0x2c] sm:$0xf]
      %v479 = vld [vmem:[%s466 + $0x30] sm:$0xf]
      %v480 = vld [vmem:[%s466 + $0x34] sm:$0xf]
      %v481 = vld [vmem:[%s466 + $0x38] sm:$0xf]
      %v482 = vld [vmem:[%s466 + $0x3c] sm:$0xf]
      %v491 = vunpack.c.l.b16 %v442
      %v492 = vunpack.c.l.b16 %v443
      %v493 = vunpack.c.l.b16 %v444
      %v494 = vunpack.c.l.b16 %v445
      %v495 = vunpack.c.l.b16 %v446
      %v496 = vunpack.c.l.b16 %v447
      %v497 = vunpack.c.l.b16 %v448
      %v498 = vunpack.c.l.b16 %v449
      %v499 = vpack.c.b16 %v492, %v491
      %v500 = vpack.c.b16 %v494, %v493
      %v501 = vpack.c.b16 %v496, %v495
      %v502 = vpack.c.b16 %v498, %v497
      %v523 = vunpack.c.l.b16 %v467
      %v524 = vunpack.c.l.b16 %v468
      %v525 = vunpack.c.l.b16 %v469
      %v526 = vunpack.c.l.b16 %v470
      %v527 = vunpack.c.l.b16 %v471
      %v528 = vunpack.c.l.b16 %v472
      %v529 = vunpack.c.l.b16 %v473
      %v530 = vunpack.c.l.b16 %v474
      %v531 = vunpack.c.l.b16 %v475
      %v532 = vunpack.c.l.b16 %v476
      %v533 = vunpack.c.l.b16 %v477
      %v534 = vunpack.c.l.b16 %v478
      %v535 = vunpack.c.l.b16 %v479
      %v536 = vunpack.c.l.b16 %v480
      %v537 = vunpack.c.l.b16 %v481
      %v538 = vunpack.c.l.b16 %v482
      %v539 = vpack.c.b16 %v524, %v523
      %v540 = vpack.c.b16 %v526, %v525
      %v541 = vpack.c.b16 %v528, %v527
      %v542 = vpack.c.b16 %v530, %v529
      %v543 = vpack.c.b16 %v532, %v531
      %v544 = vpack.c.b16 %v534, %v533
      %v545 = vpack.c.b16 %v536, %v535
      %v546 = vpack.c.b16 %v538, %v537
      %555 = vmatprep.subr.bf16.mxu0 0
      %556 = vmatpush1.bf16.msra.mxu0 %v539
      %557 = vmatprep.subr.bf16.mxu0 0
      %558 = vmatpush1.bf16.msra.mxu0 %v540
      %559 = vmatprep.subr.bf16.mxu0 0
      %560 = vmatpush1.bf16.msra.mxu0 %v541
      %561 = vmatprep.subr.bf16.mxu0 0
      %562 = vmatpush1.bf16.msra.mxu0 %v542
      %563 = vmatprep.subr.bf16.mxu0 0
      %564 = vmatpush1.bf16.msra.mxu0 %v543
      %565 = vmatprep.subr.bf16.mxu0 0
      %566 = vmatpush1.bf16.msra.mxu0 %v544
      %567 = vmatprep.subr.bf16.mxu0 0
      %568 = vmatpush1.bf16.msra.mxu0 %v545
      %569 = vmatprep.subr.bf16.mxu0 0
      %570 = vmatpush1.bf16.msra.mxu0 %v546
      %571 = vmatprep.subr.bf16.mxu0 0
      %572 = vmatpush1.bf16.msra.mxu0 0
      %573 = vmatprep.subr.bf16.mxu0 0
      %574 = vmatpush1.bf16.msra.mxu0 0
      %575 = vmatprep.subr.bf16.mxu0 0
      %576 = vmatpush1.bf16.msra.mxu0 0
      %577 = vmatprep.subr.bf16.mxu0 0
      %578 = vmatpush1.bf16.msra.mxu0 0
      %579 = vmatprep.subr.bf16.mxu0 0
      %580 = vmatpush1.bf16.msra.mxu0 0
      %581 = vmatprep.subr.bf16.mxu0 0
      %582 = vmatpush1.bf16.msra.mxu0 0
      %583 = vmatprep.subr.bf16.mxu0 0
      %584 = vmatpush1.bf16.msra.mxu0 0
      %585 = vmatprep.subr.bf16.mxu0 0
      %586 = vmatpush1.bf16.msra.mxu0 0
      %587 = vmatprep.mubr.bf16.mxu0 0
      %588 = vmatmul.mubr.bf16.gmra.mrb[0].mxu0 %v499
      %v589 = vpop.f32.mrb[0].mxu0
      %v590 = vadd.f32 0.0, %v589
      %v591 = vpop.f32.mrb[0].mxu0
      %v592 = vpop.f32.mrb[0].mxu0
      %v593 = vadd.f32 0.0, %v592
      %v594 = vpop.f32.mrb[0].mxu0
      %595 = vmatprep.mubr.bf16.mxu0 0
      %596 = vmatmul.mubr.bf16.gmra.mrb[0].mxu0 %v500
      %v597 = vpop.f32.mrb[0].mxu0
      %v598 = vadd.f32 0.0, %v597
      %v599 = vpop.f32.mrb[0].mxu0
      %v600 = vpop.f32.mrb[0].mxu0
      %v601 = vadd.f32 0.0, %v600
      %v602 = vpop.f32.mrb[0].mxu0
      %603 = vmatprep.mubr.bf16.mxu0 0
      %604 = vmatmul.mubr.bf16.gmra.mrb[0].mxu0 %v501
      %v605 = vpop.f32.mrb[0].mxu0
      %v606 = vadd.f32 0.0, %v605
      %v607 = vpop.f32.mrb[0].mxu0
      %v608 = vpop.f32.mrb[0].mxu0
      %v609 = vadd.f32 0.0, %v608
      %v610 = vpop.f32.mrb[0].mxu0
      %611 = vmatprep.mubr.bf16.mxu0 0
      %612 = vmatmul.mubr.bf16.gmra.mrb[0].mxu0 %v502
      %v613 = vpop.f32.mrb[0].mxu0
      %v614 = vadd.f32 0.0, %v613
      %v615 = vpop.f32.mrb[0].mxu0
      %v616 = vpop.f32.mrb[0].mxu0
      %v617 = vadd.f32 0.0, %v616
      %v618 = vpop.f32.mrb[0].mxu0
      %619 = vdwg.mxu0
      %v676 = vunpack.c.l.b16 %v386
      %v677 = vunpack.c.l.b16 %v387
      %v678 = vunpack.c.l.b16 %v388
      %v679 = vunpack.c.l.b16 %v389
      %v680 = vunpack.c.l.b16 %v390
      %v681 = vunpack.c.l.b16 %v391
      %v682 = vunpack.c.l.b16 %v392
      %v683 = vunpack.c.l.b16 %v393
      %v684 = vunpack.c.l.b16 %v394
      %v685 = vunpack.c.l.b16 %v395
      %v686 = vunpack.c.l.b16 %v396
      %v687 = vunpack.c.l.b16 %v397
      %v688 = vunpack.c.l.b16 %v398
      %v689 = vunpack.c.l.b16 %v399
      %v690 = vunpack.c.l.b16 %v400
      %v691 = vunpack.c.l.b16 %v401
      %v692 = vunpack.c.l.b16 %v402
      %v693 = vunpack.c.l.b16 %v403
      %v694 = vunpack.c.l.b16 %v404
      %v695 = vunpack.c.l.b16 %v405
      %v696 = vunpack.c.l.b16 %v406
      %v697 = vunpack.c.l.b16 %v407
      %v698 = vunpack.c.l.b16 %v408
      %v699 = vunpack.c.l.b16 %v409
      %v700 = vunpack.c.l.b16 %v410
      %v701 = vunpack.c.l.b16 %v411
      %v702 = vunpack.c.l.b16 %v412
      %v703 = vunpack.c.l.b16 %v413
      %v704 = vunpack.c.l.b16 %v414
      %v705 = vunpack.c.l.b16 %v415
      %v706 = vunpack.c.l.b16 %v416
      %v707 = vunpack.c.l.b16 %v417
      %v708 = vunpack.c.l.b16 %v418
      %v709 = vunpack.c.l.b16 %v419
      %v710 = vunpack.c.l.b16 %v420
      %v711 = vunpack.c.l.b16 %v421
      %v712 = vunpack.c.l.b16 %v422
      %v713 = vunpack.c.l.b16 %v423
      %v714 = vunpack.c.l.b16 %v424
      %v715 = vunpack.c.l.b16 %v425
      %v716 = vunpack.c.l.b16 %v426
      %v717 = vunpack.c.l.b16 %v427
      %v718 = vunpack.c.l.b16 %v428
      %v719 = vunpack.c.l.b16 %v429
      %v720 = vunpack.c.l.b16 %v430
      %v721 = vunpack.c.l.b16 %v431
      %v722 = vunpack.c.l.b16 %v432
      %v723 = vunpack.c.l.b16 %v433
      %v724 = vunpack.c.l.b16 %v434
      %v725 = vunpack.c.l.b16 %v435
      %v726 = vunpack.c.l.b16 %v436
      %v727 = vunpack.c.l.b16 %v437
      %v728 = vunpack.c.l.b16 %v438
      %v729 = vunpack.c.l.b16 %v439
      %v730 = vunpack.c.l.b16 %v440
      %v731 = vunpack.c.l.b16 %v441
      %v732 = vpack.c.b16 %v677, %v676
      %v733 = vpack.c.b16 %v679, %v678
      %v734 = vpack.c.b16 %v681, %v680
      %v735 = vpack.c.b16 %v683, %v682
      %v736 = vpack.c.b16 %v685, %v684
      %v737 = vpack.c.b16 %v687, %v686
      %v738 = vpack.c.b16 %v689, %v688
      %v739 = vpack.c.b16 %v691, %v690
      %v740 = vpack.c.b16 %v693, %v692
      %v741 = vpack.c.b16 %v695, %v694
      %v742 = vpack.c.b16 %v697, %v696
      %v743 = vpack.c.b16 %v699, %v698
      %v744 = vpack.c.b16 %v701, %v700
      %v745 = vpack.c.b16 %v703, %v702
      %v746 = vpack.c.b16 %v705, %v704
      %v747 = vpack.c.b16 %v707, %v706
      %v748 = vpack.c.b16 %v709, %v708
      %v749 = vpack.c.b16 %v711, %v710
      %v750 = vpack.c.b16 %v713, %v712
      %v751 = vpack.c.b16 %v715, %v714
      %v752 = vpack.c.b16 %v717, %v716
      %v753 = vpack.c.b16 %v719, %v718
      %v754 = vpack.c.b16 %v721, %v720
      %v755 = vpack.c.b16 %v723, %v722
      %v756 = vpack.c.b16 %v725, %v724
      %v757 = vpack.c.b16 %v727, %v726
      %v758 = vpack.c.b16 %v729, %v728
      %v759 = vpack.c.b16 %v731, %v730
      %788 = vmatprep.subr.bf16.mxu0 0
      %789 = vmatpush1.bf16.msra.mxu0 %v539
      %790 = vmatprep.subr.bf16.mxu0 0
      %791 = vmatpush1.bf16.msra.mxu0 %v540
      %792 = vmatprep.subr.bf16.mxu0 0
      %793 = vmatpush1.bf16.msra.mxu0 %v541
      %794 = vmatprep.subr.bf16.mxu0 0
      %795 = vmatpush1.bf16.msra.mxu0 %v542
      %796 = vmatprep.subr.bf16.mxu0 0
      %797 = vmatpush1.bf16.msra.mxu0 %v543
      %798 = vmatprep.subr.bf16.mxu0 0
      %799 = vmatpush1.bf16.msra.mxu0 %v544
      %800 = vmatprep.subr.bf16.mxu0 0
      %801 = vmatpush1.bf16.msra.mxu0 %v545
      %802 = vmatprep.subr.bf16.mxu0 0
      %803 = vmatpush1.bf16.msra.mxu0 %v546
      %804 = vmatprep.subr.bf16.mxu0 0
      %805 = vmatpush1.bf16.msra.mxu0 0
      %806 = vmatprep.subr.bf16.mxu0 0
      %807 = vmatpush1.bf16.msra.mxu0 0
      %808 = vmatprep.subr.bf16.mxu0 0
      %809 = vmatpush1.bf16.msra.mxu0 0
      %810 = vmatprep.subr.bf16.mxu0 0
      %811 = vmatpush1.bf16.msra.mxu0 0
      %812 = vmatprep.subr.bf16.mxu0 0
      %813 = vmatpush1.bf16.msra.mxu0 0
      %814 = vmatprep.subr.bf16.mxu0 0
      %815 = vmatpush1.bf16.msra.mxu0 0
      %816 = vmatprep.subr.bf16.mxu0 0
      %817 = vmatpush1.bf16.msra.mxu0 0
      %818 = vmatprep.subr.bf16.mxu0 0
      %819 = vmatpush1.bf16.msra.mxu0 0
      %820 = vmatprep.mubr.bf16.mxu0 0
      %821 = vmatmul.mubr.bf16.gmra.mrb[0].mxu0 %v732
      %v822 = vpop.f32.mrb[0].mxu0
      %v823 = vadd.f32 0.0, %v822
      %v824 = vpop.f32.mrb[0].mxu0
      %v825 = vpop.f32.mrb[0].mxu0
      %v826 = vadd.f32 0.0, %v825
      %v827 = vpop.f32.mrb[0].mxu0
      %828 = vmatprep.mubr.bf16.mxu0 0
      %829 = vmatmul.mubr.bf16.gmra.mrb[0].mxu0 %v733
      %v830 = vpop.f32.mrb[0].mxu0
      %v831 = vadd.f32 0.0, %v830
      %v832 = vpop.f32.mrb[0].mxu0
      %v833 = vpop.f32.mrb[0].mxu0
      %v834 = vadd.f32 0.0, %v833
      %v835 = vpop.f32.mrb[0].mxu0
      %836 = vmatprep.mubr.bf16.mxu0 0
      %837 = vmatmul.mubr.bf16.gmra.mrb[0].mxu0 %v734
      %v838 = vpop.f32.mrb[0].mxu0
      %v839 = vadd.f32 0.0, %v838
      %v840 = vpop.f32.mrb[0].mxu0
      %v841 = vpop.f32.mrb[0].mxu0
      %v842 = vadd.f32 0.0, %v841
      %v843 = vpop.f32.mrb[0].mxu0
      %844 = vmatprep.mubr.bf16.mxu0 0
      %845 = vmatmul.mubr.bf16.gmra.mrb[0].mxu0 %v735
      %v846 = vpop.f32.mrb[0].mxu0
      %v847 = vadd.f32 0.0, %v846
      %v848 = vpop.f32.mrb[0].mxu0
      %v849 = vpop.f32.mrb[0].mxu0
      %v850 = vadd.f32 0.0, %v849
      %v851 = vpop.f32.mrb[0].mxu0
      %852 = vmatprep.mubr.bf16.mxu0 0
      %853 = vmatmul.mubr.bf16.gmra.mrb[0].mxu0 %v736
      %v854 = vpop.f32.mrb[0].mxu0
      %v855 = vadd.f32 0.0, %v854
      %v856 = vpop.f32.mrb[0].mxu0
      %v857 = vpop.f32.mrb[0].mxu0
      %v858 = vadd.f32 0.0, %v857
      %v859 = vpop.f32.mrb[0].mxu0
      %860 = vmatprep.mubr.bf16.mxu0 0
      %861 = vmatmul.mubr.bf16.gmra.mrb[0].mxu0 %v737
      %v862 = vpop.f32.mrb[0].mxu0
      %v863 = vadd.f32 0.0, %v862
      %v864 = vpop.f32.mrb[0].mxu0
      %v865 = vpop.f32.mrb[0].mxu0
      %v866 = vadd.f32 0.0, %v865
      %v867 = vpop.f32.mrb[0].mxu0
      %868 = vmatprep.mubr.bf16.mxu0 0
      %869 = vmatmul.mubr.bf16.gmra.mrb[0].mxu0 %v738
      %v870 = vpop.f32.mrb[0].mxu0
      %v871 = vadd.f32 0.0, %v870
      %v872 = vpop.f32.mrb[0].mxu0
      %v873 = vpop.f32.mrb[0].mxu0
      %v874 = vadd.f32 0.0, %v873
      %v875 = vpop.f32.mrb[0].mxu0
      %876 = vmatprep.mubr.bf16.mxu0 0
      %877 = vmatmul.mubr.bf16.gmra.mrb[0].mxu0 %v739
      %v878 = vpop.f32.mrb[0].mxu0
      %v879 = vadd.f32 0.0, %v878
      %v880 = vpop.f32.mrb[0].mxu0
      %v881 = vpop.f32.mrb[0].mxu0
      %v882 = vadd.f32 0.0, %v881
      %v883 = vpop.f32.mrb[0].mxu0
      %884 = vmatprep.mubr.bf16.mxu0 0
      %885 = vmatmul.mubr.bf16.gmra.mrb[0].mxu0 %v740
      %v886 = vpop.f32.mrb[0].mxu0
      %v887 = vadd.f32 0.0, %v886
      %v888 = vpop.f32.mrb[0].mxu0
      %v889 = vpop.f32.mrb[0].mxu0
      %v890 = vadd.f32 0.0, %v889
      %v891 = vpop.f32.mrb[0].mxu0
      %892 = vmatprep.mubr.bf16.mxu0 0
      %893 = vmatmul.mubr.bf16.gmra.mrb[0].mxu0 %v741
      %v894 = vpop.f32.mrb[0].mxu0
      %v895 = vadd.f32 0.0, %v894
      %v896 = vpop.f32.mrb[0].mxu0
      %v897 = vpop.f32.mrb[0].mxu0
      %v898 = vadd.f32 0.0, %v897
      %v899 = vpop.f32.mrb[0].mxu0
      %900 = vmatprep.mubr.bf16.mxu0 0
      %901 = vmatmul.mubr.bf16.gmra.mrb[0].mxu0 %v742
      %v902 = vpop.f32.mrb[0].mxu0
      %v903 = vadd.f32 0.0, %v902
      %v904 = vpop.f32.mrb[0].mxu0
      %v905 = vpop.f32.mrb[0].mxu0
      %v906 = vadd.f32 0.0, %v905
      %v907 = vpop.f32.mrb[0].mxu0
      %908 = vmatprep.mubr.bf16.mxu0 0
      %909 = vmatmul.mubr.bf16.gmra.mrb[0].mxu0 %v743
      %v910 = vpop.f32.mrb[0].mxu0
      %v911 = vadd.f32 0.0, %v910
      %v912 = vpop.f32.mrb[0].mxu0
      %v913 = vpop.f32.mrb[0].mxu0
      %v914 = vadd.f32 0.0, %v913
      %v915 = vpop.f32.mrb[0].mxu0
      %916 = vmatprep.mubr.bf16.mxu0 0
      %917 = vmatmul.mubr.bf16.gmra.mrb[0].mxu0 %v744
      %v918 = vpop.f32.mrb[0].mxu0
      %v919 = vadd.f32 0.0, %v918
      %v920 = vpop.f32.mrb[0].mxu0
      %v921 = vpop.f32.mrb[0].mxu0
      %v922 = vadd.f32 0.0, %v921
      %v923 = vpop.f32.mrb[0].mxu0
      %924 = vmatprep.mubr.bf16.mxu0 0
      %925 = vmatmul.mubr.bf16.gmra.mrb[0].mxu0 %v745
      %v926 = vpop.f32.mrb[0].mxu0
      %v927 = vadd.f32 0.0, %v926
      %v928 = vpop.f32.mrb[0].mxu0
      %v929 = vpop.f32.mrb[0].mxu0
      %v930 = vadd.f32 0.0, %v929
      %v931 = vpop.f32.mrb[0].mxu0
      %932 = vmatprep.mubr.bf16.mxu0 0
      %933 = vmatmul.mubr.bf16.gmra.mrb[0].mxu0 %v746
      %v934 = vpop.f32.mrb[0].mxu0
      %v935 = vadd.f32 0.0, %v934
      %v936 = vpop.f32.mrb[0].mxu0
      %v937 = vpop.f32.mrb[0].mxu0
      %v938 = vadd.f32 0.0, %v937
      %v939 = vpop.f32.mrb[0].mxu0
      %940 = vmatprep.mubr.bf16.mxu0 0
      %941 = vmatmul.mubr.bf16.gmra.mrb[0].mxu0 %v747
      %v942 = vpop.f32.mrb[0].mxu0
      %v943 = vadd.f32 0.0, %v942
      %v944 = vpop.f32.mrb[0].mxu0
      %v945 = vpop.f32.mrb[0].mxu0
      %v946 = vadd.f32 0.0, %v945
      %v947 = vpop.f32.mrb[0].mxu0
      %948 = vmatprep.mubr.bf16.mxu0 0
      %949 = vmatmul.mubr.bf16.gmra.mrb[0].mxu0 %v748
      %v950 = vpop.f32.mrb[0].mxu0
      %v951 = vadd.f32 0.0, %v950
      %v952 = vpop.f32.mrb[0].mxu0
      %v953 = vpop.f32.mrb[0].mxu0
      %v954 = vadd.f32 0.0, %v953
      %v955 = vpop.f32.mrb[0].mxu0
      %956 = vmatprep.mubr.bf16.mxu0 0
      %957 = vmatmul.mubr.bf16.gmra.mrb[0].mxu0 %v749
      %v958 = vpop.f32.mrb[0].mxu0
      %v959 = vadd.f32 0.0, %v958
      %v960 = vpop.f32.mrb[0].mxu0
      %v961 = vpop.f32.mrb[0].mxu0
      %v962 = vadd.f32 0.0, %v961
      %v963 = vpop.f32.mrb[0].mxu0
      %964 = vmatprep.mubr.bf16.mxu0 0
      %965 = vmatmul.mubr.bf16.gmra.mrb[0].mxu0 %v750
      %v966 = vpop.f32.mrb[0].mxu0
      %v967 = vadd.f32 0.0, %v966
      %v968 = vpop.f32.mrb[0].mxu0
      %v969 = vpop.f32.mrb[0].mxu0
      %v970 = vadd.f32 0.0, %v969
      %v971 = vpop.f32.mrb[0].mxu0
      %972 = vmatprep.mubr.bf16.mxu0 0
      %973 = vmatmul.mubr.bf16.gmra.mrb[0].mxu0 %v751
      %v974 = vpop.f32.mrb[0].mxu0
      %v975 = vadd.f32 0.0, %v974
      %v976 = vpop.f32.mrb[0].mxu0
      %v977 = vpop.f32.mrb[0].mxu0
      %v978 = vadd.f32 0.0, %v977
      %v979 = vpop.f32.mrb[0].mxu0
      %980 = vmatprep.mubr.bf16.mxu0 0
      %981 = vmatmul.mubr.bf16.gmra.mrb[0].mxu0 %v752
      %v982 = vpop.f32.mrb[0].mxu0
      %v983 = vadd.f32 0.0, %v982
      %v984 = vpop.f32.mrb[0].mxu0
      %v985 = vpop.f32.mrb[0].mxu0
      %v986 = vadd.f32 0.0, %v985
      %v987 = vpop.f32.mrb[0].mxu0
      %988 = vmatprep.mubr.bf16.mxu0 0
      %989 = vmatmul.mubr.bf16.gmra.mrb[0].mxu0 %v753
      %v990 = vpop.f32.mrb[0].mxu0
      %v991 = vadd.f32 0.0, %v990
      %v992 = vpop.f32.mrb[0].mxu0
      %v993 = vpop.f32.mrb[0].mxu0
      %v994 = vadd.f32 0.0, %v993
      %v995 = vpop.f32.mrb[0].mxu0
      %996 = vmatprep.mubr.bf16.mxu0 0
      %997 = vmatmul.mubr.bf16.gmra.mrb[0].mxu0 %v754
      %v998 = vpop.f32.mrb[0].mxu0
      %v999 = vadd.f32 0.0, %v998
      %v1000 = vpop.f32.mrb[0].mxu0
      %v1001 = vpop.f32.mrb[0].mxu0
      %v1002 = vadd.f32 0.0, %v1001
      %v1003 = vpop.f32.mrb[0].mxu0
      %1004 = vmatprep.mubr.bf16.mxu0 0
      %1005 = vmatmul.mubr.bf16.gmra.mrb[0].mxu0 %v755
      %v1006 = vpop.f32.mrb[0].mxu0
      %v1007 = vadd.f32 0.0, %v1006
      %v1008 = vpop.f32.mrb[0].mxu0
      %v1009 = vpop.f32.mrb[0].mxu0
      %v1010 = vadd.f32 0.0, %v1009
      %v1011 = vpop.f32.mrb[0].mxu0
      %1012 = vmatprep.mubr.bf16.mxu0 0
      %1013 = vmatmul.mubr.bf16.gmra.mrb[0].mxu0 %v756
      %v1014 = vpop.f32.mrb[0].mxu0
      %v1015 = vadd.f32 0.0, %v1014
      %v1016 = vpop.f32.mrb[0].mxu0
      %v1017 = vpop.f32.mrb[0].mxu0
      %v1018 = vadd.f32 0.0, %v1017
      %v1019 = vpop.f32.mrb[0].mxu0
      %1020 = vmatprep.mubr.bf16.mxu0 0
      %1021 = vmatmul.mubr.bf16.gmra.mrb[0].mxu0 %v757
      %v1022 = vpop.f32.mrb[0].mxu0
      %v1023 = vadd.f32 0.0, %v1022
      %v1024 = vpop.f32.mrb[0].mxu0
      %v1025 = vpop.f32.mrb[0].mxu0
      %v1026 = vadd.f32 0.0, %v1025
      %v1027 = vpop.f32.mrb[0].mxu0
      %1028 = vmatprep.mubr.bf16.mxu0 0
      %1029 = vmatmul.mubr.bf16.gmra.mrb[0].mxu0 %v758
      %v1030 = vpop.f32.mrb[0].mxu0
      %v1031 = vadd.f32 0.0, %v1030
      %v1032 = vpop.f32.mrb[0].mxu0
      %v1033 = vpop.f32.mrb[0].mxu0
      %v1034 = vadd.f32 0.0, %v1033
      %v1035 = vpop.f32.mrb[0].mxu0
      %1036 = vmatprep.mubr.bf16.mxu0 0
      %1037 = vmatmul.mubr.bf16.gmra.mrb[0].mxu0 %v759
      %v1038 = vpop.f32.mrb[0].mxu0
      %v1039 = vadd.f32 0.0, %v1038
      %v1040 = vpop.f32.mrb[0].mxu0
      %v1041 = vpop.f32.mrb[0].mxu0
      %v1042 = vadd.f32 0.0, %v1041
      %v1043 = vpop.f32.mrb[0].mxu0
      %1044 = vdwg.mxu0
      %v1053 = vunpack.c.l.b16 %v378
      %v1054 = vunpack.c.l.b16 %v379
      %v1055 = vunpack.c.l.b16 %v380
      %v1056 = vunpack.c.l.b16 %v381
      %v1057 = vunpack.c.l.b16 %v382
      %v1058 = vunpack.c.l.b16 %v383
      %v1059 = vunpack.c.l.b16 %v384
      %v1060 = vunpack.c.l.b16 %v385
      %v1061 = vpack.c.b16 %v1054, %v1053
      %v1062 = vpack.c.b16 %v1056, %v1055
      %v1063 = vpack.c.b16 %v1058, %v1057
      %v1064 = vpack.c.b16 %v1060, %v1059
      %v1085 = vunpack.c.l.b16 %v450
      %v1086 = vunpack.c.l.b16 %v451
      %v1087 = vunpack.c.l.b16 %v452
      %v1088 = vunpack.c.l.b16 %v453
      %v1089 = vunpack.c.l.b16 %v454
      %v1090 = vunpack.c.l.b16 %v455
      %v1091 = vunpack.c.l.b16 %v456
      %v1092 = vunpack.c.l.b16 %v457
      %v1093 = vunpack.c.l.b16 %v458
      %v1094 = vunpack.c.l.b16 %v459
      %v1095 = vunpack.c.l.b16 %v460
      %v1096 = vunpack.c.l.b16 %v461
      %v1097 = vunpack.c.l.b16 %v462
      %v1098 = vunpack.c.l.b16 %v463
      %v1099 = vunpack.c.l.b16 %v464
      %v1100 = vunpack.c.l.b16 %v465
      %v1101 = vpack.c.b16 %v1086, %v1085
      %v1102 = vpack.c.b16 %v1088, %v1087
      %v1103 = vpack.c.b16 %v1090, %v1089
      %v1104 = vpack.c.b16 %v1092, %v1091
      %v1105 = vpack.c.b16 %v1094, %v1093
      %v1106 = vpack.c.b16 %v1096, %v1095
      %v1107 = vpack.c.b16 %v1098, %v1097
      %v1108 = vpack.c.b16 %v1100, %v1099
      %1117 = vmatprep.subr.bf16.mxu0 0
      %1118 = vmatpush1.bf16.msra.mxu0 %v1101
      %1119 = vmatprep.subr.bf16.mxu0 0
      %1120 = vmatpush1.bf16.msra.mxu0 %v1102
      %1121 = vmatprep.subr.bf16.mxu0 0
      %1122 = vmatpush1.bf16.msra.mxu0 %v1103
      %1123 = vmatprep.subr.bf16.mxu0 0
      %1124 = vmatpush1.bf16.msra.mxu0 %v1104
      %1125 = vmatprep.subr.bf16.mxu0 0
      %1126 = vmatpush1.bf16.msra.mxu0 %v1105
      %1127 = vmatprep.subr.bf16.mxu0 0
      %1128 = vmatpush1.bf16.msra.mxu0 %v1106
      %1129 = vmatprep.subr.bf16.mxu0 0
      %1130 = vmatpush1.bf16.msra.mxu0 %v1107
      %1131 = vmatprep.subr.bf16.mxu0 0
      %1132 = vmatpush1.bf16.msra.mxu0 %v1108
      %1133 = vmatprep.subr.bf16.mxu0 0
      %1134 = vmatpush1.bf16.msra.mxu0 0
      %1135 = vmatprep.subr.bf16.mxu0 0
      %1136 = vmatpush1.bf16.msra.mxu0 0
      %1137 = vmatprep.subr.bf16.mxu0 0
      %1138 = vmatpush1.bf16.msra.mxu0 0
      %1139 = vmatprep.subr.bf16.mxu0 0
      %1140 = vmatpush1.bf16.msra.mxu0 0
      %1141 = vmatprep.subr.bf16.mxu0 0
      %1142 = vmatpush1.bf16.msra.mxu0 0
      %1143 = vmatprep.subr.bf16.mxu0 0
      %1144 = vmatpush1.bf16.msra.mxu0 0
      %1145 = vmatprep.subr.bf16.mxu0 0
      %1146 = vmatpush1.bf16.msra.mxu0 0
      %1147 = vmatprep.subr.bf16.mxu0 0
      %1148 = vmatpush1.bf16.msra.mxu0 0
      %1149 = vmatprep.mubr.bf16.mxu0 0
      %1150 = vmatmul.mubr.bf16.gmra.mrb[0].mxu0 %v1061
      %v1151 = vpop.f32.mrb[0].mxu0
      %v1152 = vadd.f32 %v823, %v1151
      %v1153 = vpop.f32.mrb[0].mxu0
      %v1154 = vpop.f32.mrb[0].mxu0
      %v1155 = vadd.f32 %v826, %v1154
      %v1156 = vpop.f32.mrb[0].mxu0
      %1157 = vmatprep.mubr.bf16.mxu0 0
      %1158 = vmatmul.mubr.bf16.gmra.mrb[0].mxu0 %v1062
      %v1159 = vpop.f32.mrb[0].mxu0
      %v1160 = vadd.f32 %v831, %v1159
      %v1161 = vpop.f32.mrb[0].mxu0
      %v1162 = vpop.f32.mrb[0].mxu0
      %v1163 = vadd.f32 %v834, %v1162
      %v1164 = vpop.f32.mrb[0].mxu0
      %1165 = vmatprep.mubr.bf16.mxu0 0
      %1166 = vmatmul.mubr.bf16.gmra.mrb[0].mxu0 %v1063
      %v1167 = vpop.f32.mrb[0].mxu0
      %v1168 = vadd.f32 %v839, %v1167
      %v1169 = vpop.f32.mrb[0].mxu0
      %v1170 = vpop.f32.mrb[0].mxu0
      %v1171 = vadd.f32 %v842, %v1170
      %v1172 = vpop.f32.mrb[0].mxu0
      %1173 = vmatprep.mubr.bf16.mxu0 0
      %1174 = vmatmul.mubr.bf16.gmra.mrb[0].mxu0 %v1064
      %v1175 = vpop.f32.mrb[0].mxu0
      %v1176 = vadd.f32 %v847, %v1175
      %v1177 = vpop.f32.mrb[0].mxu0
      %v1178 = vpop.f32.mrb[0].mxu0
      %v1179 = vadd.f32 %v850, %v1178
      %v1180 = vpop.f32.mrb[0].mxu0
      %1181 = vmatprep.mubr.bf16.mxu0 0
      %1182 = vmatmul.mubr.bf16.gmra.mrb[0].mxu0 %v732
      %v1183 = vpop.f32.mrb[0].mxu0
      %v1184 = vadd.f32 %v855, %v1183
      %v1185 = vpop.f32.mrb[0].mxu0
      %v1186 = vpop.f32.mrb[0].mxu0
      %v1187 = vadd.f32 %v858, %v1186
      %v1188 = vpop.f32.mrb[0].mxu0
      %1189 = vmatprep.mubr.bf16.mxu0 0
      %1190 = vmatmul.mubr.bf16.gmra.mrb[0].mxu0 %v733
      %v1191 = vpop.f32.mrb[0].mxu0
      %v1192 = vadd.f32 %v863, %v1191
      %v1193 = vpop.f32.mrb[0].mxu0
      %v1194 = vpop.f32.mrb[0].mxu0
      %v1195 = vadd.f32 %v866, %v1194
      %v1196 = vpop.f32.mrb[0].mxu0
      %1197 = vmatprep.mubr.bf16.mxu0 0
      %1198 = vmatmul.mubr.bf16.gmra.mrb[0].mxu0 %v734
      %v1199 = vpop.f32.mrb[0].mxu0
      %v1200 = vadd.f32 %v871, %v1199
      %v1201 = vpop.f32.mrb[0].mxu0
      %v1202 = vpop.f32.mrb[0].mxu0
      %v1203 = vadd.f32 %v874, %v1202
      %v1204 = vpop.f32.mrb[0].mxu0
      %1205 = vmatprep.mubr.bf16.mxu0 0
      %1206 = vmatmul.mubr.bf16.gmra.mrb[0].mxu0 %v735
      %v1207 = vpop.f32.mrb[0].mxu0
      %v1208 = vadd.f32 %v879, %v1207
      %v1209 = vpop.f32.mrb[0].mxu0
      %v1210 = vpop.f32.mrb[0].mxu0
      %v1211 = vadd.f32 %v882, %v1210
      %v1212 = vpop.f32.mrb[0].mxu0
      %1213 = vmatprep.mubr.bf16.mxu0 0
      %1214 = vmatmul.mubr.bf16.gmra.mrb[0].mxu0 %v736
      %v1215 = vpop.f32.mrb[0].mxu0
      %v1216 = vadd.f32 %v887, %v1215
      %v1217 = vpop.f32.mrb[0].mxu0
      %v1218 = vpop.f32.mrb[0].mxu0
      %v1219 = vadd.f32 %v890, %v1218
      %v1220 = vpop.f32.mrb[0].mxu0
      %1221 = vmatprep.mubr.bf16.mxu0 0
      %1222 = vmatmul.mubr.bf16.gmra.mrb[0].mxu0 %v737
      %v1223 = vpop.f32.mrb[0].mxu0
      %v1224 = vadd.f32 %v895, %v1223
      %v1225 = vpop.f32.mrb[0].mxu0
      %v1226 = vpop.f32.mrb[0].mxu0
      %v1227 = vadd.f32 %v898, %v1226
      %v1228 = vpop.f32.mrb[0].mxu0
      %1229 = vmatprep.mubr.bf16.mxu0 0
      %1230 = vmatmul.mubr.bf16.gmra.mrb[0].mxu0 %v738
      %v1231 = vpop.f32.mrb[0].mxu0
      %v1232 = vadd.f32 %v903, %v1231
      %v1233 = vpop.f32.mrb[0].mxu0
      %v1234 = vpop.f32.mrb[0].mxu0
      %v1235 = vadd.f32 %v906, %v1234
      %v1236 = vpop.f32.mrb[0].mxu0
      %1237 = vmatprep.mubr.bf16.mxu0 0
      %1238 = vmatmul.mubr.bf16.gmra.mrb[0].mxu0 %v739
      %v1239 = vpop.f32.mrb[0].mxu0
      %v1240 = vadd.f32 %v911, %v1239
      %v1241 = vpop.f32.mrb[0].mxu0
      %v1242 = vpop.f32.mrb[0].mxu0
      %v1243 = vadd.f32 %v914, %v1242
      %v1244 = vpop.f32.mrb[0].mxu0
      %1245 = vmatprep.mubr.bf16.mxu0 0
      %1246 = vmatmul.mubr.bf16.gmra.mrb[0].mxu0 %v740
      %v1247 = vpop.f32.mrb[0].mxu0
      %v1248 = vadd.f32 %v919, %v1247
      %v1249 = vpop.f32.mrb[0].mxu0
      %v1250 = vpop.f32.mrb[0].mxu0
      %v1251 = vadd.f32 %v922, %v1250
      %v1252 = vpop.f32.mrb[0].mxu0
      %1253 = vmatprep.mubr.bf16.mxu0 0
      %1254 = vmatmul.mubr.bf16.gmra.mrb[0].mxu0 %v741
      %v1255 = vpop.f32.mrb[0].mxu0
      %v1256 = vadd.f32 %v927, %v1255
      %v1257 = vpop.f32.mrb[0].mxu0
      %v1258 = vpop.f32.mrb[0].mxu0
      %v1259 = vadd.f32 %v930, %v1258
      %v1260 = vpop.f32.mrb[0].mxu0
      %1261 = vmatprep.mubr.bf16.mxu0 0
      %1262 = vmatmul.mubr.bf16.gmra.mrb[0].mxu0 %v742
      %v1263 = vpop.f32.mrb[0].mxu0
      %v1264 = vadd.f32 %v935, %v1263
      %v1265 = vpop.f32.mrb[0].mxu0
      %v1266 = vpop.f32.mrb[0].mxu0
      %v1267 = vadd.f32 %v938, %v1266
      %v1268 = vpop.f32.mrb[0].mxu0
      %1269 = vmatprep.mubr.bf16.mxu0 0
      %1270 = vmatmul.mubr.bf16.gmra.mrb[0].mxu0 %v743
      %v1271 = vpop.f32.mrb[0].mxu0
      %v1272 = vadd.f32 %v943, %v1271
      %v1273 = vpop.f32.mrb[0].mxu0
      %v1274 = vpop.f32.mrb[0].mxu0
      %v1275 = vadd.f32 %v946, %v1274
      %v1276 = vpop.f32.mrb[0].mxu0
      %1277 = vmatprep.mubr.bf16.mxu0 0
      %1278 = vmatmul.mubr.bf16.gmra.mrb[0].mxu0 %v744
      %v1279 = vpop.f32.mrb[0].mxu0
      %v1280 = vadd.f32 %v951, %v1279
      %v1281 = vpop.f32.mrb[0].mxu0
      %v1282 = vpop.f32.mrb[0].mxu0
      %v1283 = vadd.f32 %v954, %v1282
      %v1284 = vpop.f32.mrb[0].mxu0
      %1285 = vmatprep.mubr.bf16.mxu0 0
      %1286 = vmatmul.mubr.bf16.gmra.mrb[0].mxu0 %v745
      %v1287 = vpop.f32.mrb[0].mxu0
      %v1288 = vadd.f32 %v959, %v1287
      %v1289 = vpop.f32.mrb[0].mxu0
      %v1290 = vpop.f32.mrb[0].mxu0
      %v1291 = vadd.f32 %v962, %v1290
      %v1292 = vpop.f32.mrb[0].mxu0
      %1293 = vmatprep.mubr.bf16.mxu0 0
      %1294 = vmatmul.mubr.bf16.gmra.mrb[0].mxu0 %v746
      %v1295 = vpop.f32.mrb[0].mxu0
      %v1296 = vadd.f32 %v967, %v1295
      %v1297 = vpop.f32.mrb[0].mxu0
      %v1298 = vpop.f32.mrb[0].mxu0
      %v1299 = vadd.f32 %v970, %v1298
      %v1300 = vpop.f32.mrb[0].mxu0
      %1301 = vmatprep.mubr.bf16.mxu0 0
      %1302 = vmatmul.mubr.bf16.gmra.mrb[0].mxu0 %v747
      %v1303 = vpop.f32.mrb[0].mxu0
      %v1304 = vadd.f32 %v975, %v1303
      %v1305 = vpop.f32.mrb[0].mxu0
      %v1306 = vpop.f32.mrb[0].mxu0
      %v1307 = vadd.f32 %v978, %v1306
      %v1308 = vpop.f32.mrb[0].mxu0
      %1309 = vmatprep.mubr.bf16.mxu0 0
      %1310 = vmatmul.mubr.bf16.gmra.mrb[0].mxu0 %v748
      %v1311 = vpop.f32.mrb[0].mxu0
      %v1312 = vadd.f32 %v983, %v1311
      %v1313 = vpop.f32.mrb[0].mxu0
      %v1314 = vpop.f32.mrb[0].mxu0
      %v1315 = vadd.f32 %v986, %v1314
      %v1316 = vpop.f32.mrb[0].mxu0
      %1317 = vmatprep.mubr.bf16.mxu0 0
      %1318 = vmatmul.mubr.bf16.gmra.mrb[0].mxu0 %v749
      %v1319 = vpop.f32.mrb[0].mxu0
      %v1320 = vadd.f32 %v991, %v1319
      %v1321 = vpop.f32.mrb[0].mxu0
      %v1322 = vpop.f32.mrb[0].mxu0
      %v1323 = vadd.f32 %v994, %v1322
      %v1324 = vpop.f32.mrb[0].mxu0
      %1325 = vmatprep.mubr.bf16.mxu0 0
      %1326 = vmatmul.mubr.bf16.gmra.mrb[0].mxu0 %v750
      %v1327 = vpop.f32.mrb[0].mxu0
      %v1328 = vadd.f32 %v999, %v1327
      %v1329 = vpop.f32.mrb[0].mxu0
      %v1330 = vpop.f32.mrb[0].mxu0
      %v1331 = vadd.f32 %v1002, %v1330
      %v1332 = vpop.f32.mrb[0].mxu0
      %1333 = vmatprep.mubr.bf16.mxu0 0
      %1334 = vmatmul.mubr.bf16.gmra.mrb[0].mxu0 %v751
      %v1335 = vpop.f32.mrb[0].mxu0
      %v1336 = vadd.f32 %v1007, %v1335
      %v1337 = vpop.f32.mrb[0].mxu0
      %v1338 = vpop.f32.mrb[0].mxu0
      %v1339 = vadd.f32 %v1010, %v1338
      %v1340 = vpop.f32.mrb[0].mxu0
      %1341 = vmatprep.mubr.bf16.mxu0 0
      %1342 = vmatmul.mubr.bf16.gmra.mrb[0].mxu0 %v752
      %v1343 = vpop.f32.mrb[0].mxu0
      %v1344 = vadd.f32 %v1015, %v1343
      %v1345 = vpop.f32.mrb[0].mxu0
      %v1346 = vpop.f32.mrb[0].mxu0
      %v1347 = vadd.f32 %v1018, %v1346
      %v1348 = vpop.f32.mrb[0].mxu0
      %1349 = vmatprep.mubr.bf16.mxu0 0
      %1350 = vmatmul.mubr.bf16.gmra.mrb[0].mxu0 %v753
      %v1351 = vpop.f32.mrb[0].mxu0
      %v1352 = vadd.f32 %v1023, %v1351
      %v1353 = vpop.f32.mrb[0].mxu0
      %v1354 = vpop.f32.mrb[0].mxu0
      %v1355 = vadd.f32 %v1026, %v1354
      %v1356 = vpop.f32.mrb[0].mxu0
      %1357 = vmatprep.mubr.bf16.mxu0 0
      %1358 = vmatmul.mubr.bf16.gmra.mrb[0].mxu0 %v754
      %v1359 = vpop.f32.mrb[0].mxu0
      %v1360 = vadd.f32 %v1031, %v1359
      %v1361 = vpop.f32.mrb[0].mxu0
      %v1362 = vpop.f32.mrb[0].mxu0
      %v1363 = vadd.f32 %v1034, %v1362
      %v1364 = vpop.f32.mrb[0].mxu0
      %1365 = vmatprep.mubr.bf16.mxu0 0
      %1366 = vmatmul.mubr.bf16.gmra.mrb[0].mxu0 %v755
      %v1367 = vpop.f32.mrb[0].mxu0
      %v1368 = vadd.f32 %v1039, %v1367
      %v1369 = vpop.f32.mrb[0].mxu0
      %v1370 = vpop.f32.mrb[0].mxu0
      %v1371 = vadd.f32 %v1042, %v1370
      %v1372 = vpop.f32.mrb[0].mxu0
      %1373 = vmatprep.mubr.bf16.mxu0 0
      %1374 = vmatmul.mubr.bf16.gmra.mrb[0].mxu0 %v756
      %v1375 = vpop.f32.mrb[0].mxu0
      %v1376 = vadd.f32 %v590, %v1375
      %v1377 = vpop.f32.mrb[0].mxu0
      %v1378 = vpop.f32.mrb[0].mxu0
      %v1379 = vadd.f32 %v593, %v1378
      %v1380 = vpop.f32.mrb[0].mxu0
      %1381 = vmatprep.mubr.bf16.mxu0 0
      %1382 = vmatmul.mubr.bf16.gmra.mrb[0].mxu0 %v757
      %v1383 = vpop.f32.mrb[0].mxu0
      %v1384 = vadd.f32 %v598, %v1383
      %v1385 = vpop.f32.mrb[0].mxu0
      %v1386 = vpop.f32.mrb[0].mxu0
      %v1387 = vadd.f32 %v601, %v1386
      %v1388 = vpop.f32.mrb[0].mxu0
      %1389 = vmatprep.mubr.bf16.mxu0 0
      %1390 = vmatmul.mubr.bf16.gmra.mrb[0].mxu0 %v758
      %v1391 = vpop.f32.mrb[0].mxu0
      %v1392 = vadd.f32 %v606, %v1391
      %v1393 = vpop.f32.mrb[0].mxu0
      %v1394 = vpop.f32.mrb[0].mxu0
      %v1395 = vadd.f32 %v609, %v1394
      %v1396 = vpop.f32.mrb[0].mxu0
      %1397 = vmatprep.mubr.bf16.mxu0 0
      %1398 = vmatmul.mubr.bf16.gmra.mrb[0].mxu0 %v759
      %v1399 = vpop.f32.mrb[0].mxu0
      %v1400 = vadd.f32 %v614, %v1399
      %v1401 = vpop.f32.mrb[0].mxu0
      %v1402 = vpop.f32.mrb[0].mxu0
      %v1403 = vadd.f32 %v617, %v1402
      %v1404 = vpop.f32.mrb[0].mxu0
      %1405 = vdwg.mxu0
      %vm1406 = vcmask 64512
      %v1407 = vsel %vm1406, %v1152, 0.0
      %v1408 = vsel %vm1406, %v1155, 0.0
      %v1409 = vadd.f32 %v1407, %v1408
      %v1410 = vsel %vm1406, %v1160, 0.0
      %v1411 = vadd.f32 %v1409, %v1410
      %v1412 = vsel %vm1406, %v1163, 0.0
      %v1413 = vadd.f32 %v1411, %v1412
      %v1414 = vsel %vm1406, %v1168, 0.0
      %v1415 = vadd.f32 %v1413, %v1414
      %v1416 = vsel %vm1406, %v1171, 0.0
      %v1417 = vadd.f32 %v1415, %v1416
      %v1418 = vsel %vm1406, %v1176, 0.0
      %v1419 = vadd.f32 %v1417, %v1418
      %v1420 = vsel %vm1406, %v1179, 0.0
      %v1421 = vadd.f32 %v1419, %v1420
      %v1422 = vsel %vm1406, %v1184, 0.0
      %v1423 = vadd.f32 %v1421, %v1422
      %v1424 = vsel %vm1406, %v1187, 0.0
      %v1425 = vadd.f32 %v1423, %v1424
      %v1426 = vsel %vm1406, %v1192, 0.0
      %v1427 = vadd.f32 %v1425, %v1426
      %v1428 = vsel %vm1406, %v1195, 0.0
      %v1429 = vadd.f32 %v1427, %v1428
      %v1430 = vsel %vm1406, %v1200, 0.0
      %v1431 = vadd.f32 %v1429, %v1430
      %v1432 = vsel %vm1406, %v1203, 0.0
      %v1433 = vadd.f32 %v1431, %v1432
      %v1434 = vsel %vm1406, %v1208, 0.0
      %v1435 = vadd.f32 %v1433, %v1434
      %v1436 = vsel %vm1406, %v1211, 0.0
      %v1437 = vadd.f32 %v1435, %v1436
      %v1438 = vsel %vm1406, %v1216, 0.0
      %v1439 = vadd.f32 %v1437, %v1438
      %v1440 = vsel %vm1406, %v1219, 0.0
      %v1441 = vadd.f32 %v1439, %v1440
      %v1442 = vsel %vm1406, %v1224, 0.0
      %v1443 = vadd.f32 %v1441, %v1442
      %v1444 = vsel %vm1406, %v1227, 0.0
      %v1445 = vadd.f32 %v1443, %v1444
      %v1446 = vsel %vm1406, %v1232, 0.0
      %v1447 = vadd.f32 %v1445, %v1446
      %v1448 = vsel %vm1406, %v1235, 0.0
      %v1449 = vadd.f32 %v1447, %v1448
      %v1450 = vsel %vm1406, %v1240, 0.0
      %v1451 = vadd.f32 %v1449, %v1450
      %v1452 = vsel %vm1406, %v1243, 0.0
      %v1453 = vadd.f32 %v1451, %v1452
      %v1454 = vsel %vm1406, %v1248, 0.0
      %v1455 = vadd.f32 %v1453, %v1454
      %v1456 = vsel %vm1406, %v1251, 0.0
      %v1457 = vadd.f32 %v1455, %v1456
      %v1458 = vsel %vm1406, %v1256, 0.0
      %v1459 = vadd.f32 %v1457, %v1458
      %v1460 = vsel %vm1406, %v1259, 0.0
      %v1461 = vadd.f32 %v1459, %v1460
      %v1462 = vsel %vm1406, %v1264, 0.0
      %v1463 = vadd.f32 %v1461, %v1462
      %v1464 = vsel %vm1406, %v1267, 0.0
      %v1465 = vadd.f32 %v1463, %v1464
      %v1466 = vsel %vm1406, %v1272, 0.0
      %v1467 = vadd.f32 %v1465, %v1466
      %v1468 = vsel %vm1406, %v1275, 0.0
      %v1469 = vadd.f32 %v1467, %v1468
      %v1470 = vsel %vm1406, %v1280, 0.0
      %v1471 = vadd.f32 %v1469, %v1470
      %v1472 = vsel %vm1406, %v1283, 0.0
      %v1473 = vadd.f32 %v1471, %v1472
      %v1474 = vsel %vm1406, %v1288, 0.0
      %v1475 = vadd.f32 %v1473, %v1474
      %v1476 = vsel %vm1406, %v1291, 0.0
      %v1477 = vadd.f32 %v1475, %v1476
      %v1478 = vsel %vm1406, %v1296, 0.0
      %v1479 = vadd.f32 %v1477, %v1478
      %v1480 = vsel %vm1406, %v1299, 0.0
      %v1481 = vadd.f32 %v1479, %v1480
      %v1482 = vsel %vm1406, %v1304, 0.0
      %v1483 = vadd.f32 %v1481, %v1482
      %v1484 = vsel %vm1406, %v1307, 0.0
      %v1485 = vadd.f32 %v1483, %v1484
      %v1486 = vsel %vm1406, %v1312, 0.0
      %v1487 = vadd.f32 %v1485, %v1486
      %v1488 = vsel %vm1406, %v1315, 0.0
      %v1489 = vadd.f32 %v1487, %v1488
      %v1490 = vsel %vm1406, %v1320, 0.0
      %v1491 = vadd.f32 %v1489, %v1490
      %v1492 = vsel %vm1406, %v1323, 0.0
      %v1493 = vadd.f32 %v1491, %v1492
      %v1494 = vsel %vm1406, %v1328, 0.0
      %v1495 = vadd.f32 %v1493, %v1494
      %v1496 = vsel %vm1406, %v1331, 0.0
      %v1497 = vadd.f32 %v1495, %v1496
      %v1498 = vsel %vm1406, %v1336, 0.0
      %v1499 = vadd.f32 %v1497, %v1498
      %v1500 = vsel %vm1406, %v1339, 0.0
      %v1501 = vadd.f32 %v1499, %v1500
      %v1502 = vsel %vm1406, %v1344, 0.0
      %v1503 = vadd.f32 %v1501, %v1502
      %v1504 = vsel %vm1406, %v1347, 0.0
      %v1505 = vadd.f32 %v1503, %v1504
      %v1506 = vsel %vm1406, %v1352, 0.0
      %v1507 = vadd.f32 %v1505, %v1506
      %v1508 = vsel %vm1406, %v1355, 0.0
      %v1509 = vadd.f32 %v1507, %v1508
      %v1510 = vsel %vm1406, %v1360, 0.0
      %v1511 = vadd.f32 %v1509, %v1510
      %v1512 = vsel %vm1406, %v1363, 0.0
      %v1513 = vadd.f32 %v1511, %v1512
      %v1514 = vsel %vm1406, %v1368, 0.0
      %v1515 = vadd.f32 %v1513, %v1514
      %v1516 = vsel %vm1406, %v1371, 0.0
      %v1517 = vadd.f32 %v1515, %v1516
      %v1518 = vsel %vm1406, %v1376, 0.0
      %v1519 = vadd.f32 %v1517, %v1518
      %v1520 = vsel %vm1406, %v1379, 0.0
      %v1521 = vadd.f32 %v1519, %v1520
      %v1522 = vsel %vm1406, %v1384, 0.0
      %v1523 = vadd.f32 %v1521, %v1522
      %v1524 = vsel %vm1406, %v1387, 0.0
      %v1525 = vadd.f32 %v1523, %v1524
      %v1526 = vsel %vm1406, %v1392, 0.0
      %v1527 = vadd.f32 %v1525, %v1526
      %v1528 = vsel %vm1406, %v1395, 0.0
      %v1529 = vadd.f32 %v1527, %v1528
      %v1530 = vsel %vm1406, %v1400, 0.0
      %v1531 = vadd.f32 %v1529, %v1530
      %v1532 = vsel %vm1406, %v1403, 0.0
      %v1533 = vadd.f32 %v1531, %v1532
      %v1534 = vrot.slane %v1533, 4
      %v1535 = vadd.f32 %v1533, %v1534
      %v1536 = vrot.slane %v1535, 2
      %v1537 = vadd.f32 %v1535, %v1536
      %v1538 = vrot.slane %v1537, 1
      %v1539 = vadd.f32 %v1537, %v1538
      %1541 = vbcast.lane.b32.xlu0 %v1539, 256
      %v1542 = vpop.permute.xlu0 %1541
      %vm1543 = vcmask 7168
      %1544 = vst.msk [vmem:[%s369] sm:$0xff] %vm1543, %v1542
      %v1545 = vmul.f32 %v1152, %v1152
      %v1546 = vmul.f32 %v1155, %v1155
      %v1547 = vmul.f32 %v1160, %v1160
      %v1548 = vmul.f32 %v1163, %v1163
      %v1549 = vmul.f32 %v1168, %v1168
      %v1550 = vmul.f32 %v1171, %v1171
      %v1551 = vmul.f32 %v1176, %v1176
      %v1552 = vmul.f32 %v1179, %v1179
      %v1553 = vmul.f32 %v1184, %v1184
      %v1554 = vmul.f32 %v1187, %v1187
      %v1555 = vmul.f32 %v1192, %v1192
      %v1556 = vmul.f32 %v1195, %v1195
      %v1557 = vmul.f32 %v1200, %v1200
      %v1558 = vmul.f32 %v1203, %v1203
      %v1559 = vmul.f32 %v1208, %v1208
      %v1560 = vmul.f32 %v1211, %v1211
      %v1561 = vmul.f32 %v1216, %v1216
      %v1562 = vmul.f32 %v1219, %v1219
      %v1563 = vmul.f32 %v1224, %v1224
      %v1564 = vmul.f32 %v1227, %v1227
      %v1565 = vmul.f32 %v1232, %v1232
      %v1566 = vmul.f32 %v1235, %v1235
      %v1567 = vmul.f32 %v1240, %v1240
      %v1568 = vmul.f32 %v1243, %v1243
      %v1569 = vmul.f32 %v1248, %v1248
      %v1570 = vmul.f32 %v1251, %v1251
      %v1571 = vmul.f32 %v1256, %v1256
      %v1572 = vmul.f32 %v1259, %v1259
      %v1573 = vmul.f32 %v1264, %v1264
      %v1574 = vmul.f32 %v1267, %v1267
      %v1575 = vmul.f32 %v1272, %v1272
      %v1576 = vmul.f32 %v1275, %v1275
      %v1577 = vmul.f32 %v1280, %v1280
      %v1578 = vmul.f32 %v1283, %v1283
      %v1579 = vmul.f32 %v1288, %v1288
      %v1580 = vmul.f32 %v1291, %v1291
      %v1581 = vmul.f32 %v1296, %v1296
      %v1582 = vmul.f32 %v1299, %v1299
      %v1583 = vmul.f32 %v1304, %v1304
      %v1584 = vmul.f32 %v1307, %v1307
      %v1585 = vmul.f32 %v1312, %v1312
      %v1586 = vmul.f32 %v1315, %v1315
      %v1587 = vmul.f32 %v1320, %v1320
      %v1588 = vmul.f32 %v1323, %v1323
      %v1589 = vmul.f32 %v1328, %v1328
      %v1590 = vmul.f32 %v1331, %v1331
      %v1591 = vmul.f32 %v1336, %v1336
      %v1592 = vmul.f32 %v1339, %v1339
      %v1593 = vmul.f32 %v1344, %v1344
      %v1594 = vmul.f32 %v1347, %v1347
      %v1595 = vmul.f32 %v1352, %v1352
      %v1596 = vmul.f32 %v1355, %v1355
      %v1597 = vmul.f32 %v1360, %v1360
      %v1598 = vmul.f32 %v1363, %v1363
      %v1599 = vmul.f32 %v1368, %v1368
      %v1600 = vmul.f32 %v1371, %v1371
      %v1601 = vmul.f32 %v1376, %v1376
      %v1602 = vmul.f32 %v1379, %v1379
      %v1603 = vmul.f32 %v1384, %v1384
      %v1604 = vmul.f32 %v1387, %v1387
      %v1605 = vmul.f32 %v1392, %v1392
      %v1606 = vmul.f32 %v1395, %v1395
      %v1607 = vmul.f32 %v1400, %v1400
      %v1608 = vmul.f32 %v1403, %v1403
      %v1609 = vsel %vm1406, %v1545, 0.0
      %v1610 = vsel %vm1406, %v1546, 0.0
      %v1611 = vadd.f32 %v1609, %v1610
      %v1612 = vsel %vm1406, %v1547, 0.0
      %v1613 = vadd.f32 %v1611, %v1612
      %v1614 = vsel %vm1406, %v1548, 0.0
      %v1615 = vadd.f32 %v1613, %v1614
      %v1616 = vsel %vm1406, %v1549, 0.0
      %v1617 = vadd.f32 %v1615, %v1616
      %v1618 = vsel %vm1406, %v1550, 0.0
      %v1619 = vadd.f32 %v1617, %v1618
      %v1620 = vsel %vm1406, %v1551, 0.0
      %v1621 = vadd.f32 %v1619, %v1620
      %v1622 = vsel %vm1406, %v1552, 0.0
      %v1623 = vadd.f32 %v1621, %v1622
      %v1624 = vsel %vm1406, %v1553, 0.0
      %v1625 = vadd.f32 %v1623, %v1624
      %v1626 = vsel %vm1406, %v1554, 0.0
      %v1627 = vadd.f32 %v1625, %v1626
      %v1628 = vsel %vm1406, %v1555, 0.0
      %v1629 = vadd.f32 %v1627, %v1628
      %v1630 = vsel %vm1406, %v1556, 0.0
      %v1631 = vadd.f32 %v1629, %v1630
      %v1632 = vsel %vm1406, %v1557, 0.0
      %v1633 = vadd.f32 %v1631, %v1632
      %v1634 = vsel %vm1406, %v1558, 0.0
      %v1635 = vadd.f32 %v1633, %v1634
      %v1636 = vsel %vm1406, %v1559, 0.0
      %v1637 = vadd.f32 %v1635, %v1636
      %v1638 = vsel %vm1406, %v1560, 0.0
      %v1639 = vadd.f32 %v1637, %v1638
      %v1640 = vsel %vm1406, %v1561, 0.0
      %v1641 = vadd.f32 %v1639, %v1640
      %v1642 = vsel %vm1406, %v1562, 0.0
      %v1643 = vadd.f32 %v1641, %v1642
      %v1644 = vsel %vm1406, %v1563, 0.0
      %v1645 = vadd.f32 %v1643, %v1644
      %v1646 = vsel %vm1406, %v1564, 0.0
      %v1647 = vadd.f32 %v1645, %v1646
      %v1648 = vsel %vm1406, %v1565, 0.0
      %v1649 = vadd.f32 %v1647, %v1648
      %v1650 = vsel %vm1406, %v1566, 0.0
      %v1651 = vadd.f32 %v1649, %v1650
      %v1652 = vsel %vm1406, %v1567, 0.0
      %v1653 = vadd.f32 %v1651, %v1652
      %v1654 = vsel %vm1406, %v1568, 0.0
      %v1655 = vadd.f32 %v1653, %v1654
      %v1656 = vsel %vm1406, %v1569, 0.0
      %v1657 = vadd.f32 %v1655, %v1656
      %v1658 = vsel %vm1406, %v1570, 0.0
      %v1659 = vadd.f32 %v1657, %v1658
      %v1660 = vsel %vm1406, %v1571, 0.0
      %v1661 = vadd.f32 %v1659, %v1660
      %v1662 = vsel %vm1406, %v1572, 0.0
      %v1663 = vadd.f32 %v1661, %v1662
      %v1664 = vsel %vm1406, %v1573, 0.0
      %v1665 = vadd.f32 %v1663, %v1664
      %v1666 = vsel %vm1406, %v1574, 0.0
      %v1667 = vadd.f32 %v1665, %v1666
      %v1668 = vsel %vm1406, %v1575, 0.0
      %v1669 = vadd.f32 %v1667, %v1668
      %v1670 = vsel %vm1406, %v1576, 0.0
      %v1671 = vadd.f32 %v1669, %v1670
      %v1672 = vsel %vm1406, %v1577, 0.0
      %v1673 = vadd.f32 %v1671, %v1672
      %v1674 = vsel %vm1406, %v1578, 0.0
      %v1675 = vadd.f32 %v1673, %v1674
      %v1676 = vsel %vm1406, %v1579, 0.0
      %v1677 = vadd.f32 %v1675, %v1676
      %v1678 = vsel %vm1406, %v1580, 0.0
      %v1679 = vadd.f32 %v1677, %v1678
      %v1680 = vsel %vm1406, %v1581, 0.0
      %v1681 = vadd.f32 %v1679, %v1680
      %v1682 = vsel %vm1406, %v1582, 0.0
      %v1683 = vadd.f32 %v1681, %v1682
      %v1684 = vsel %vm1406, %v1583, 0.0
      %v1685 = vadd.f32 %v1683, %v1684
      %v1686 = vsel %vm1406, %v1584, 0.0
      %v1687 = vadd.f32 %v1685, %v1686
      %v1688 = vsel %vm1406, %v1585, 0.0
      %v1689 = vadd.f32 %v1687, %v1688
      %v1690 = vsel %vm1406, %v1586, 0.0
      %v1691 = vadd.f32 %v1689, %v1690
      %v1692 = vsel %vm1406, %v1587, 0.0
      %v1693 = vadd.f32 %v1691, %v1692
      %v1694 = vsel %vm1406, %v1588, 0.0
      %v1695 = vadd.f32 %v1693, %v1694
      %v1696 = vsel %vm1406, %v1589, 0.0
      %v1697 = vadd.f32 %v1695, %v1696
      %v1698 = vsel %vm1406, %v1590, 0.0
      %v1699 = vadd.f32 %v1697, %v1698
      %v1700 = vsel %vm1406, %v1591, 0.0
      %v1701 = vadd.f32 %v1699, %v1700
      %v1702 = vsel %vm1406, %v1592, 0.0
      %v1703 = vadd.f32 %v1701, %v1702
      %v1704 = vsel %vm1406, %v1593, 0.0
      %v1705 = vadd.f32 %v1703, %v1704
      %v1706 = vsel %vm1406, %v1594, 0.0
      %v1707 = vadd.f32 %v1705, %v1706
      %v1708 = vsel %vm1406, %v1595, 0.0
      %v1709 = vadd.f32 %v1707, %v1708
      %v1710 = vsel %vm1406, %v1596, 0.0
      %v1711 = vadd.f32 %v1709, %v1710
      %v1712 = vsel %vm1406, %v1597, 0.0
      %v1713 = vadd.f32 %v1711, %v1712
      %v1714 = vsel %vm1406, %v1598, 0.0
      %v1715 = vadd.f32 %v1713, %v1714
      %v1716 = vsel %vm1406, %v1599, 0.0
      %v1717 = vadd.f32 %v1715, %v1716
      %v1718 = vsel %vm1406, %v1600, 0.0
      %v1719 = vadd.f32 %v1717, %v1718
      %v1720 = vsel %vm1406, %v1601, 0.0
      %v1721 = vadd.f32 %v1719, %v1720
      %v1722 = vsel %vm1406, %v1602, 0.0
      %v1723 = vadd.f32 %v1721, %v1722
      %v1724 = vsel %vm1406, %v1603, 0.0
      %v1725 = vadd.f32 %v1723, %v1724
      %v1726 = vsel %vm1406, %v1604, 0.0
      %v1727 = vadd.f32 %v1725, %v1726
      %v1728 = vsel %vm1406, %v1605, 0.0
      %v1729 = vadd.f32 %v1727, %v1728
      %v1730 = vsel %vm1406, %v1606, 0.0
      %v1731 = vadd.f32 %v1729, %v1730
      %v1732 = vsel %vm1406, %v1607, 0.0
      %v1733 = vadd.f32 %v1731, %v1732
      %v1734 = vsel %vm1406, %v1608, 0.0
      %v1735 = vadd.f32 %v1733, %v1734
      %v1736 = vrot.slane %v1735, 4
      %v1737 = vadd.f32 %v1735, %v1736
      %v1738 = vrot.slane %v1737, 2
      %v1739 = vadd.f32 %v1737, %v1738
      %v1740 = vrot.slane %v1739, 1
      %v1741 = vadd.f32 %v1739, %v1740
      %1743 = vbcast.lane.b32.xlu0 %v1741, 256
      %v1744 = vpop.permute.xlu0 %1743
      %1745 = vst.msk [vmem:[%s376] sm:$0xff] %vm1543, %v1744
      %1746 = vxpose.xlu0.b32.start [1/16] %v1152, 128
      %1747 = vxpose.xlu0.b32.cont [2/16] %v1155, 128
      %1748 = vxpose.xlu0.b32.cont [3/16] %v1160, 128
      %1749 = vxpose.xlu0.b32.cont [4/16] %v1163, 128
      %1750 = vxpose.xlu0.b32.cont [5/16] %v1168, 128
      %1751 = vxpose.xlu0.b32.cont [6/16] %v1171, 128
      %1752 = vxpose.xlu0.b32.cont [7/16] %v1176, 128
      %1753 = vxpose.xlu0.b32.cont [8/16] %v1179, 128
      %1754 = vxpose.xlu0.b32.cont [9/16] %v1184, 128
      %1755 = vxpose.xlu0.b32.cont [10/16] %v1187, 128
      %1756 = vxpose.xlu0.b32.cont [11/16] %v1192, 128
      %1757 = vxpose.xlu0.b32.cont [12/16] %v1195, 128
      %1758 = vxpose.xlu0.b32.cont [13/16] %v1200, 128
      %1759 = vxpose.xlu0.b32.cont [14/16] %v1203, 128
      %1760 = vxpose.xlu0.b32.cont [15/16] %v1208, 128
      %1761 = vxpose.xlu0.b32.end [16/16] %v1211, 128
      %v1762 = vpop.trf.xlu0
      %v1763 = vpop.trf.xlu0
      %v1764 = vpop.trf.xlu0
      %v1765 = vpop.trf.xlu0
      %v1766 = vpop.trf.xlu0
      %v1767 = vpop.trf.xlu0
      %v1768 = vpop.trf.xlu0
      %v1769 = vpop.trf.xlu0
      %v1770 = vpop.trf.xlu0
      %v1771 = vpop.trf.xlu0
      %v1772 = vpop.trf.xlu0
      %v1773 = vpop.trf.xlu0
      %v1774 = vpop.trf.xlu0
      %v1775 = vpop.trf.xlu0
      %v1776 = vpop.trf.xlu0
      %v1777 = vpop.trf.xlu0
      %1778 = vxpose.xlu0.b32.start [1/16] %v1216, 128
      %1779 = vxpose.xlu0.b32.cont [2/16] %v1219, 128
      %1780 = vxpose.xlu0.b32.cont [3/16] %v1224, 128
      %1781 = vxpose.xlu0.b32.cont [4/16] %v1227, 128
      %1782 = vxpose.xlu0.b32.cont [5/16] %v1232, 128
      %1783 = vxpose.xlu0.b32.cont [6/16] %v1235, 128
      %1784 = vxpose.xlu0.b32.cont [7/16] %v1240, 128
      %1785 = vxpose.xlu0.b32.cont [8/16] %v1243, 128
      %1786 = vxpose.xlu0.b32.cont [9/16] %v1248, 128
      %1787 = vxpose.xlu0.b32.cont [10/16] %v1251, 128
      %1788 = vxpose.xlu0.b32.cont [11/16] %v1256, 128
      %1789 = vxpose.xlu0.b32.cont [12/16] %v1259, 128
      %1790 = vxpose.xlu0.b32.cont [13/16] %v1264, 128
      %1791 = vxpose.xlu0.b32.cont [14/16] %v1267, 128
      %1792 = vxpose.xlu0.b32.cont [15/16] %v1272, 128
      %1793 = vxpose.xlu0.b32.end [16/16] %v1275, 128
      %v1794 = vpop.trf.xlu0
      %v1795 = vpop.trf.xlu0
      %v1796 = vpop.trf.xlu0
      %v1797 = vpop.trf.xlu0
      %v1798 = vpop.trf.xlu0
      %v1799 = vpop.trf.xlu0
      %v1800 = vpop.trf.xlu0
      %v1801 = vpop.trf.xlu0
      %v1802 = vpop.trf.xlu0
      %v1803 = vpop.trf.xlu0
      %v1804 = vpop.trf.xlu0
      %v1805 = vpop.trf.xlu0
      %v1806 = vpop.trf.xlu0
      %v1807 = vpop.trf.xlu0
      %v1808 = vpop.trf.xlu0
      %v1809 = vpop.trf.xlu0
      %1810 = vxpose.xlu0.b32.start [1/16] %v1280, 128
      %1811 = vxpose.xlu0.b32.cont [2/16] %v1283, 128
      %1812 = vxpose.xlu0.b32.cont [3/16] %v1288, 128
      %1813 = vxpose.xlu0.b32.cont [4/16] %v1291, 128
      %1814 = vxpose.xlu0.b32.cont [5/16] %v1296, 128
      %1815 = vxpose.xlu0.b32.cont [6/16] %v1299, 128
      %1816 = vxpose.xlu0.b32.cont [7/16] %v1304, 128
      %1817 = vxpose.xlu0.b32.cont [8/16] %v1307, 128
      %1818 = vxpose.xlu0.b32.cont [9/16] %v1312, 128
      %1819 = vxpose.xlu0.b32.cont [10/16] %v1315, 128
      %1820 = vxpose.xlu0.b32.cont [11/16] %v1320, 128
      %1821 = vxpose.xlu0.b32.cont [12/16] %v1323, 128
      %1822 = vxpose.xlu0.b32.cont [13/16] %v1328, 128
      %1823 = vxpose.xlu0.b32.cont [14/16] %v1331, 128
      %1824 = vxpose.xlu0.b32.cont [15/16] %v1336, 128
      %1825 = vxpose.xlu0.b32.end [16/16] %v1339, 128
      %v1826 = vpop.trf.xlu0
      %v1827 = vpop.trf.xlu0
      %v1828 = vpop.trf.xlu0
      %v1829 = vpop.trf.xlu0
      %v1830 = vpop.trf.xlu0
      %v1831 = vpop.trf.xlu0
      %v1832 = vpop.trf.xlu0
      %v1833 = vpop.trf.xlu0
      %v1834 = vpop.trf.xlu0
      %v1835 = vpop.trf.xlu0
      %v1836 = vpop.trf.xlu0
      %v1837 = vpop.trf.xlu0
      %v1838 = vpop.trf.xlu0
      %v1839 = vpop.trf.xlu0
      %v1840 = vpop.trf.xlu0
      %v1841 = vpop.trf.xlu0
      %1842 = vxpose.xlu0.b32.start [1/16] %v1344, 128
      %1843 = vxpose.xlu0.b32.cont [2/16] %v1347, 128
      %1844 = vxpose.xlu0.b32.cont [3/16] %v1352, 128
      %1845 = vxpose.xlu0.b32.cont [4/16] %v1355, 128
      %1846 = vxpose.xlu0.b32.cont [5/16] %v1360, 128
      %1847 = vxpose.xlu0.b32.cont [6/16] %v1363, 128
      %1848 = vxpose.xlu0.b32.cont [7/16] %v1368, 128
      %1849 = vxpose.xlu0.b32.cont [8/16] %v1371, 128
      %1850 = vxpose.xlu0.b32.cont [9/16] %v1376, 128
      %1851 = vxpose.xlu0.b32.cont [10/16] %v1379, 128
      %1852 = vxpose.xlu0.b32.cont [11/16] %v1384, 128
      %1853 = vxpose.xlu0.b32.cont [12/16] %v1387, 128
      %1854 = vxpose.xlu0.b32.cont [13/16] %v1392, 128
      %1855 = vxpose.xlu0.b32.cont [14/16] %v1395, 128
      %1856 = vxpose.xlu0.b32.cont [15/16] %v1400, 128
      %1857 = vxpose.xlu0.b32.end [16/16] %v1403, 128
      %v1858 = vpop.trf.xlu0
      %v1859 = vpop.trf.xlu0
      %v1860 = vpop.trf.xlu0
      %v1861 = vpop.trf.xlu0
      %v1862 = vpop.trf.xlu0
      %v1863 = vpop.trf.xlu0
      %v1864 = vpop.trf.xlu0
      %v1865 = vpop.trf.xlu0
      %v1866 = vpop.trf.xlu0
      %v1867 = vpop.trf.xlu0
      %v1868 = vpop.trf.xlu0
      %v1869 = vpop.trf.xlu0
      %v1870 = vpop.trf.xlu0
      %v1871 = vpop.trf.xlu0
      %v1872 = vpop.trf.xlu0
      %v1873 = vpop.trf.xlu0
      %v1874 = vpack.c.bf16 %v1762, %v1762
      %v1875 = vpack.c.bf16 %v1794, %v1794
      %v1876 = vpack.c.bf16 %v1826, %v1826
      %v1877 = vpack.c.bf16 %v1858, %v1858
      %v1882 = vunpack.c.l.b16 %v1874
      %v1883 = vunpack.c.l.b16 %v1875
      %v1884 = vunpack.c.l.b16 %v1876
      %v1885 = vunpack.c.l.b16 %v1877
      %v1886 = vpack.c.b16 %v1883, %v1882
      %v1887 = vpack.c.b16 %v1885, %v1884
      %1890 = vst [vmem:[%s361] sm:$0xff] %v1886
      %1891 = vst [vmem:[%s361 + $0x8] sm:$0xff] %v1887
      %s1892 = smul.u32 4, %s22
      %p1893 = scmp.lt.s32.totalorder %s21, 1
      %s1894 = scalar_select %p1893, %s21, 1
      %p1895 = scmp.lt.s32.totalorder %s1892, 3
      %s1896 = scalar_select %p1895, %s1892, 3
      %s1897 = smul.addr %s1894, 4
      %s1898 = sadd.s32 %s1896, %s1897
      %s1899 = smul.addr %s1898, 4
      %s1900 = scalar_lea.vmem %s3, %s1899
      %p1901 = scmp.lt.s32.totalorder %s21, 1
      %s1902 = scalar_select %p1901, %s21, 1
      %p1903 = scmp.lt.s32.totalorder %s22, 0
      %s1904 = scalar_select %p1903, %s22, 0
      %s1905 = sadd.s32 %s1904, %s1902
      %s1906 = smul.addr %s1905, 8
      %s1907 = scalar_lea.vmem %s4, %s1906
      %p1908 = scmp.lt.s32.totalorder %s21, 1
      %s1909 = scalar_select %p1908, %s21, 1
      %p1910 = scmp.lt.s32.totalorder %s22, 0
      %s1911 = scalar_select %p1910, %s22, 0
      %s1912 = sadd.s32 %s1911, %s1909
      %s1913 = smul.addr %s1912, 8
      %s1914 = scalar_lea.vmem %s5, %s1913
      // Predicated region
      $region33: #{conv_down_forward.2} parent=31 // pred_check
        %p1915 = pneg %p130
      $region34: #{conv_down_forward.2} parent=31 // pred_check_branch
        %1917 = sbr.rel (%p1915) target = $region36
      $region35: #{conv_down_forward.2} parent=31 // pred_region
        %s1918 = smul.u32 4, %s22
      $region36: #{conv_down_forward.2} parent=31 // pred_fallthru
        _
      // Predicated region
      $region37: #{conv_down_forward.2} parent=31 // pred_check
        %p1919 = pneg %p158
      $region38: #{conv_down_forward.2} parent=31 // pred_check_branch
        %1921 = sbr.rel (%p1919) target = $region40
      $region39: #{conv_down_forward.2} parent=31 // pred_region
        _
      $region40: #{conv_down_forward.2} parent=31 // pred_fallthru
        _
      // Predicated region
      $region41: #{conv_down_forward.2} parent=31 // pred_check
        %p1922 = pneg %p186
      $region42: #{conv_down_forward.2} parent=31 // pred_check_branch
        %1924 = sbr.rel (%p1922) target = $region44
      $region43: #{conv_down_forward.2} parent=31 // pred_region
        _
      $region44: #{conv_down_forward.2} parent=31 // pred_fallthru
        _
    $region32: #{conv_down_forward.2} parent=5 // pred_fallthru
      _
    %p1925 = scmp.le.s32.totalorder 2, %s12
    // Predicated region
    $region45: #{conv_down_forward.2} parent=5 // pred_check
      %p1926 = pneg %p1925
    $region46: #{conv_down_forward.2} parent=5 // pred_check_branch
      %1928 = sbr.rel (%p1926) target = $region48
    $region47: #{conv_down_forward.2} parent=5 // pred_region
      %s1929 = ssub.s32 %s12, 2
      // Predicated region
      $region49: #{conv_down_forward.2} parent=47 // pred_check
        %p1930 = pneg %p136
      $region50: #{conv_down_forward.2} parent=47 // pred_check_branch
        %1932 = sbr.rel (%p1930) target = $region52
      $region51: #{conv_down_forward.2} parent=47 // pred_region
        %s1933 = smul.u32 4, %s24
        %p1934 = scmp.lt.s32.totalorder %s23, 1
        %s1935 = scalar_select %p1934, %s23, 1
        %p1936 = scmp.lt.s32.totalorder %s1933, 3
        %s1937 = scalar_select %p1936, %s1933, 3
        %s1938 = smul.addr %s1935, 4
        %s1939 = sadd.s32 %s1937, %s1938
        %s1940 = smul.addr %s1939, 4
        %s1941 = scalar_lea.vmem %s3, %s1940
      $region52: #{conv_down_forward.2} parent=47 // pred_fallthru
        _
      // Predicated region
      $region53: #{conv_down_forward.2} parent=47 // pred_check
        %p1942 = pneg %p164
      $region54: #{conv_down_forward.2} parent=47 // pred_check_branch
        %1944 = sbr.rel (%p1942) target = $region56
      $region55: #{conv_down_forward.2} parent=47 // pred_region
        %p1945 = scmp.lt.s32.totalorder %s23, 1
        %s1946 = scalar_select %p1945, %s23, 1
        %p1947 = scmp.lt.s32.totalorder %s24, 0
        %s1948 = scalar_select %p1947, %s24, 0
        %s1949 = sadd.s32 %s1948, %s1946
        %s1950 = smul.addr %s1949, 8
        %s1951 = scalar_lea.vmem %s4, %s1950
      $region56: #{conv_down_forward.2} parent=47 // pred_fallthru
        _
      // Predicated region
      $region57: #{conv_down_forward.2} parent=47 // pred_check
        %p1952 = pneg %p192
      $region58: #{conv_down_forward.2} parent=47 // pred_check_branch
        %1954 = sbr.rel (%p1952) target = $region60
      $region59: #{conv_down_forward.2} parent=47 // pred_region
        %p1955 = scmp.lt.s32.totalorder %s23, 1
        %s1956 = scalar_select %p1955, %s23, 1
        %p1957 = scmp.lt.s32.totalorder %s24, 0
        %s1958 = scalar_select %p1957, %s24, 0
        %s1959 = sadd.s32 %s1958, %s1956
        %s1960 = smul.addr %s1959, 8
        %s1961 = scalar_lea.vmem %s5, %s1960
      $region60: #{conv_down_forward.2} parent=47 // pred_fallthru
        _
    $region48: #{conv_down_forward.2} parent=5 // pred_fallthru
      _
  $region6: #{conv_down_forward.2} parent=0 // loop_footer
    %s16 = sadd.s32 1, %s12
  $region7: #{conv_down_forward.2} parent=0 // loop_footer_branch
    %11 = sbr.rel target = $region3
  $region8: #{conv_down_forward.2} parent=0 // loop_exit
    _

// kernel: conv_down_forward.3
$region0: #{conv_down_forward.3}
  #allocation0 [shape = 'u32[]', space=smem, size = 0x4, offset = 0x4, fixed_abs, tag = 'smem constant byte address 0x4 - core index']
  #allocation1 [shape = 'u32[144,128]{1,0:T(1,128)}', space=vmem, size = 0x12000, scoped, tag = 'internal scratch']
  %s0 = inlined_call_operand.vmem [shape: bf16[2,8,512], index: 0, kind: input, shape index: {}]
  %s1 = inlined_call_operand.vmem [shape: f32[1,8,1], index: 1, kind: input, shape index: {}]
  %s2 = inlined_call_operand.vmem [shape: f32[1,8,1], index: 2, kind: input, shape index: {}]
  %s3 = inlined_call_operand.vmem [shape: f32[2,8,512], index: 3, kind: output, shape index: {}]
  %s4 = sld [smem:[#allocation0]]
  $region45: #{conv_down_forward.3} parent=0
    _
  %s6 = ssub.s32 1, %s4
  %s7 = scalar_select 0, %s6, %s4
  loop: start=0, step=1, limit=4
  $region2: #{conv_down_forward.3} parent=0 // loop_pre_header
    _
  $region3: #{conv_down_forward.3} parent=0 // loop_header
    %s9 = sphi 0, %s13
    %p10 = scmp.ge.s32.totalorder %s9, 4
    %s16 = sphi 0, %s28
    %s17 = sphi 0, %s24
    %s18 = sphi 0, %s16
    %s19 = sphi 0, %s17
    %s20 = sphi 0, %s18
    %s21 = sphi 0, %s19
    %s33 = sphi 0, %s35
    %s36 = sphi 0, %s33
    %s37 = sphi 0, %s36
    %s53 = sphi 0, %s37
    %s57 = sphi 0, %s57
    %s59 = sphi 0, %s57
    %s60 = sphi 0, %s59
    %s74 = sphi 0, %s60
    %s78 = sphi 0, %s78
    %s80 = sphi 0, %s78
    %s81 = sphi 0, %s80
    %s95 = sphi 0, %s81
    %s103 = sphi 0, %s105
    %s106 = sphi 0, %s103
    %s107 = sphi 0, %s106
    %s123 = sphi 0, %s107
  $region4: #{conv_down_forward.3} parent=0 // loop_header_branch
    %12 = sbr.rel (%p10) target = $region8
  $region5: #{conv_down_forward.3} parent=0 // loop_body
    %s14 = ssub.s32 %s9, 1
    %s15 = ssub.s32 %s9, 2
    %s22 = sadd.s32 1, %s17
    %p23 = scmp.ge.s32.totalorder %s22, 1
    %s24 = scalar_select %p23, 0, %s22
    %s25 = sadd.s32 1, %s16
    %s26 = scalar_select %p23, %s25, %s16
    %p27 = scmp.ge.s32.totalorder %s26, 2
    %s28 = scalar_select %p27, 0, %s26
    %s29 = ssub.s32 %s16, %s28
    %s30 = ssub.s32 %s17, %s24
    %s31 = sor.u32 %s29, %s30
    %p32 = scmp.eq.s32.totalorder %s31, 0
    %s34 = sadd.s32 %s33, 1
    %s35 = scalar_select %p32, %s33, %s34
    %p38 = pneg %p32
    %p39 = scmp.eq.s32.totalorder %s9, 1
    %p40 = por %p38, %p39
    %p41 = scmp.ne.s32.totalorder %s33, %s36
    %p42 = scmp.eq.s32.totalorder %s9, 0
    %p43 = por %p41, %p42
    %p44 = scmp.ne.s32.totalorder %s33, %s36
    %p45 = scmp.eq.s32.totalorder %s14, 1
    %p46 = por %p44, %p45
    %p47 = scmp.ne.s32.totalorder %s36, %s37
    %p48 = scmp.eq.s32.totalorder %s14, 0
    %p49 = por %p47, %p48
    %p50 = scmp.ne.s32.totalorder %s36, %s37
    %p51 = scmp.eq.s32.totalorder %s15, 1
    %p52 = por %p50, %p51
    %p54 = scmp.ne.s32.totalorder %s37, %s53
    %p55 = scmp.eq.s32.totalorder %s15, 0
    %p56 = por %p54, %p55
    %s58 = sadd.s32 %s57, 1
    %p61 = scmp.eq.s32.totalorder %s9, 1
    %p62 = scmp.ne.s32.totalorder %s57, %s59
    %p63 = scmp.eq.s32.totalorder %s9, 0
    %p64 = por %p62, %p63
    %p65 = scmp.ne.s32.totalorder %s57, %s59
    %p66 = scmp.eq.s32.totalorder %s14, 1
    %p67 = por %p65, %p66
    %p68 = scmp.ne.s32.totalorder %s59, %s60
    %p69 = scmp.eq.s32.totalorder %s14, 0
    %p70 = por %p68, %p69
    %p71 = scmp.ne.s32.totalorder %s59, %s60
    %p72 = scmp.eq.s32.totalorder %s15, 1
    %p73 = por %p71, %p72
    %p75 = scmp.ne.s32.totalorder %s60, %s74
    %p76 = scmp.eq.s32.totalorder %s15, 0
    %p77 = por %p75, %p76
    %s79 = sadd.s32 %s78, 1
    %p82 = scmp.eq.s32.totalorder %s9, 1
    %p83 = scmp.ne.s32.totalorder %s78, %s80
    %p84 = scmp.eq.s32.totalorder %s9, 0
    %p85 = por %p83, %p84
    %p86 = scmp.ne.s32.totalorder %s78, %s80
    %p87 = scmp.eq.s32.totalorder %s14, 1
    %p88 = por %p86, %p87
    %p89 = scmp.ne.s32.totalorder %s80, %s81
    %p90 = scmp.eq.s32.totalorder %s14, 0
    %p91 = por %p89, %p90
    %p92 = scmp.ne.s32.totalorder %s80, %s81
    %p93 = scmp.eq.s32.totalorder %s15, 1
    %p94 = por %p92, %p93
    %p96 = scmp.ne.s32.totalorder %s81, %s95
    %p97 = scmp.eq.s32.totalorder %s15, 0
    %p98 = por %p96, %p97
    %s99 = ssub.s32 %s16, %s28
    %s100 = ssub.s32 %s17, %s24
    %s101 = sor.u32 %s99, %s100
    %p102 = scmp.eq.s32.totalorder %s101, 0
    %s104 = sadd.s32 %s103, 1
    %s105 = scalar_select %p102, %s103, %s104
    %p108 = pneg %p102
    %p109 = scmp.eq.s32.totalorder %s9, 1
    %p110 = por %p108, %p109
    %p111 = scmp.ne.s32.totalorder %s103, %s106
    %p112 = scmp.eq.s32.totalorder %s9, 0
    %p113 = por %p111, %p112
    %p114 = scmp.ne.s32.totalorder %s103, %s106
    %p115 = scmp.eq.s32.totalorder %s14, 1
    %p116 = por %p114, %p115
    %p117 = scmp.ne.s32.totalorder %s106, %s107
    %p118 = scmp.eq.s32.totalorder %s14, 0
    %p119 = por %p117, %p118
    %p120 = scmp.ne.s32.totalorder %s106, %s107
    %p121 = scmp.eq.s32.totalorder %s15, 1
    %p122 = por %p120, %p121
    %p124 = scmp.ne.s32.totalorder %s107, %s123
    %p125 = scmp.eq.s32.totalorder %s15, 0
    %p126 = por %p124, %p125
    %p127 = scmp.le.s32.totalorder 1, %s9
    %p128 = scmp.lt.s32.totalorder %s9, 3
    %p129 = pnand %p127, %p128
    %p130 = pneg %p129
    // Predicated region
    $region9: #{conv_down_forward.3} parent=5 // pred_check
      _
    $region10: #{conv_down_forward.3} parent=5 // pred_check_branch
      %132 = sbr.rel (%p129) target = $region12
    $region11: #{conv_down_forward.3} parent=5 // pred_region
      %s133 = ssub.s32 %s9, 1
      // Predicated region
      $region13: #{conv_down_forward.3} parent=11 // pred_check
        %p134 = pneg %p70
      $region14: #{conv_down_forward.3} parent=11 // pred_check_branch
        %136 = sbr.rel (%p134) target = $region16
      $region15: #{conv_down_forward.3} parent=11 // pred_region
        _
      $region16: #{conv_down_forward.3} parent=11 // pred_fallthru
        _
      // Predicated region
      $region17: #{conv_down_forward.3} parent=11 // pred_check
        %p137 = pneg %p91
      $region18: #{conv_down_forward.3} parent=11 // pred_check_branch
        %139 = sbr.rel (%p137) target = $region20
      $region19: #{conv_down_forward.3} parent=11 // pred_region
        _
      $region20: #{conv_down_forward.3} parent=11 // pred_fallthru
        _
    $region12: #{conv_down_forward.3} parent=5 // pred_fallthru
      _
    %p140 = scmp.lt.s32.totalorder %s9, 2
    // Predicated region
    $region21: #{conv_down_forward.3} parent=5 // pred_check
      %p141 = pneg %p140
    $region22: #{conv_down_forward.3} parent=5 // pred_check_branch
      %143 = sbr.rel (%p141) target = $region24
    $region23: #{conv_down_forward.3} parent=5 // pred_region
      // Predicated region
      $region25: #{conv_down_forward.3} parent=23 // pred_check
        %p144 = pneg %p43
      $region26: #{conv_down_forward.3} parent=23 // pred_check_branch
        %146 = sbr.rel (%p144) target = $region28
      $region27: #{conv_down_forward.3} parent=23 // pred_region
        %s147 = smul.u32 4, %s17
        %p148 = scmp.lt.s32.totalorder %s16, 1
        %s149 = scalar_select %p148, %s16, 1
        %p150 = scmp.lt.s32.totalorder %s147, 3
        %s151 = scalar_select %p150, %s147, 3
        %s152 = smul.addr %s149, 4
        %s153 = sadd.s32 %s151, %s152
        %s154 = smul.addr %s153, 4
        %s155 = scalar_lea.vmem %s0, %s154
        %s156 = smul.u32 4, %s17
      $region28: #{conv_down_forward.3} parent=23 // pred_fallthru
        _
    $region24: #{conv_down_forward.3} parent=5 // pred_fallthru
      _
    %p157 = scmp.le.s32.totalorder 1, %s9
    %p158 = scmp.lt.s32.totalorder %s9, 3
    %p159 = pnand %p157, %p158
    %p160 = pneg %p159
    // Predicated region
    $region29: #{conv_down_forward.3} parent=5 // pred_check
      _
    $region30: #{conv_down_forward.3} parent=5 // pred_check_branch
      %162 = sbr.rel (%p159) target = $region32
    $region31: #{conv_down_forward.3} parent=5 // pred_region
      %s163 = ssub.s32 %s9, 1
      %s164 = smul.u32 4, %s19
      %p165 = scmp.lt.s32.totalorder %s18, 1
      %s166 = scalar_select %p165, %s18, 1
      %p167 = scmp.lt.s32.totalorder %s164, 3
      %s168 = scalar_select %p167, %s164, 3
      %s169 = smul.addr %s166, 4
      %s170 = sadd.s32 %s168, %s169
      %s171 = smul.addr %s170, 4
      %s172 = scalar_lea.vmem %s0, %s171
      %p173 = pneg %p49
      %p174 = pneg %p46
      %p175 = pneg %p70
      %p176 = pneg %p67
      %p177 = pneg %p91
      %p178 = pneg %p88
      %p179 = pneg %p119
      %p180 = pneg %p116
      %s181 = smul.u32 4, %s19
      %p182 = scmp.lt.s32.totalorder %s18, 1
      %s183 = scalar_select %p182, %s18, 1
      %p184 = scmp.lt.s32.totalorder %s181, 3
      %s185 = scalar_select %p184, %s181, 3
      %s186 = smul.addr %s183, 4
      %s187 = sadd.s32 %s185, %s186
      %s188 = smul.addr %s187, 8
      %s189 = scalar_lea.vmem %s3, %s188
      %s190 = smul.u32 4, %s19
      %p191 = scmp.lt.s32.totalorder %s18, 1
      %s192 = scalar_select %p191, %s18, 1
      %p193 = scmp.lt.s32.totalorder %s190, 3
      %s194 = scalar_select %p193, %s190, 3
      %s195 = smul.addr %s192, 4
      %s196 = sadd.s32 %s194, %s195
      %s197 = smul.addr %s196, 4
      %s198 = scalar_lea.vmem %s0, %s197
      %s199 = smul.u32 4, %s19
      %s200 = smul.u32 4, %s19
      %p201 = scmp.lt.s32.totalorder %s18, 1
      %s202 = scalar_select %p201, %s18, 1
      %p203 = scmp.lt.s32.totalorder %s200, 3
      %s204 = scalar_select %p203, %s200, 3
      %s205 = smul.addr %s202, 4
      %s206 = sadd.s32 %s204, %s205
      %s207 = smul.addr %s206, 8
      %s208 = scalar_lea.vmem %s3, %s207
      %s209 = smul.u32 4, %s19
      %v210 = vld [vmem:[%s1] sm:$0xff]
      %v211 = vld [vmem:[%s198] sm:$0xff]
      %v212 = vld [vmem:[%s198 + $0x8] sm:$0xff]
      %v213 = vunpack.c.l.bf16 %v211
      %v214 = vunpack.c.h.bf16 %v211
      %v215 = vunpack.c.l.bf16 %v212
      %v216 = vunpack.c.h.bf16 %v212
      %218 = vset.pattern.permute.xlu0 0
      %219 = vperm.xlu0 %218, %v210
      %v220 = vpop.permute.xlu0 %219
      %v222 = vmul.f32 %v220, %v213
      %v223 = vmul.f32 %v220, %v214
      %v224 = vmul.f32 %v220, %v215
      %v225 = vmul.f32 %v220, %v216
      %v226 = vld [vmem:[%s2] sm:$0xff]
      %228 = vset.pattern.permute.xlu0 0
      %229 = vperm.xlu0 %228, %v226
      %v230 = vpop.permute.xlu0 %229
      %v232 = vadd.f32 %v222, %v230
      %v233 = vadd.f32 %v223, %v230
      %v234 = vadd.f32 %v224, %v230
      %v235 = vadd.f32 %v225, %v230
      %v236 = vmax.f32 %v232, 0.0
      %v237 = vmax.f32 %v233, 0.0
      %v238 = vmax.f32 %v234, 0.0
      %v239 = vmax.f32 %v235, 0.0
      %240 = vst [vmem:[%s208] sm:$0xff] %v236
      %241 = vst [vmem:[%s208 + $0x8] sm:$0xff] %v237
      %242 = vst [vmem:[%s208 + $0x10] sm:$0xff] %v238
      %243 = vst [vmem:[%s208 + $0x18] sm:$0xff] %v239
      %s244 = smul.u32 4, %s19
      %p245 = scmp.lt.s32.totalorder %s18, 1
      %s246 = scalar_select %p245, %s18, 1
      %p247 = scmp.lt.s32.totalorder %s244, 3
      %s248 = scalar_select %p247, %s244, 3
      %s249 = smul.addr %s246, 4
      %s250 = sadd.s32 %s248, %s249
      %s251 = smul.addr %s250, 8
      %s252 = scalar_lea.vmem %s3, %s251
      // Predicated region
      $region33: #{conv_down_forward.3} parent=31 // pred_check
        %p253 = pneg %p116
      $region34: #{conv_down_forward.3} parent=31 // pred_check_branch
        %255 = sbr.rel (%p253) target = $region36
      $region35: #{conv_down_forward.3} parent=31 // pred_region
        %s256 = smul.u32 4, %s19
      $region36: #{conv_down_forward.3} parent=31 // pred_fallthru
        _
    $region32: #{conv_down_forward.3} parent=5 // pred_fallthru
      _
    %p257 = scmp.le.s32.totalorder 2, %s9
    // Predicated region
    $region37: #{conv_down_forward.3} parent=5 // pred_check
      %p258 = pneg %p257
    $region38: #{conv_down_forward.3} parent=5 // pred_check_branch
      %260 = sbr.rel (%p258) target = $region40
    $region39: #{conv_down_forward.3} parent=5 // pred_region
      %s261 = ssub.s32 %s9, 2
      // Predicated region
      $region41: #{conv_down_forward.3} parent=39 // pred_check
        %p262 = pneg %p122
      $region42: #{conv_down_forward.3} parent=39 // pred_check_branch
        %264 = sbr.rel (%p262) target = $region44
      $region43: #{conv_down_forward.3} parent=39 // pred_region
        %s265 = smul.u32 4, %s21
        %p266 = scmp.lt.s32.totalorder %s20, 1
        %s267 = scalar_select %p266, %s20, 1
        %p268 = scmp.lt.s32.totalorder %s265, 3
        %s269 = scalar_select %p268, %s265, 3
        %s270 = smul.addr %s267, 4
        %s271 = sadd.s32 %s269, %s270
        %s272 = smul.addr %s271, 8
        %s273 = scalar_lea.vmem %s3, %s272
      $region44: #{conv_down_forward.3} parent=39 // pred_fallthru
        _
    $region40: #{conv_down_forward.3} parent=5 // pred_fallthru
      _
  $region6: #{conv_down_forward.3} parent=0 // loop_footer
    %s13 = sadd.s32 1, %s9
  $region7: #{conv_down_forward.3} parent=0 // loop_footer_branch
    %8 = sbr.rel target = $region3
  $region8: #{conv_down_forward.3} parent=0 // loop_exit
    _

</llo_original>
